<compile_context>
chip_gen: v5e
topology: v5e:2x2
jax: 0.10.0
libtpu: 0.0.40
codegen_flags: <defaults>
</compile_context>

<pallas_src>
import math

import jax
import jax.numpy as jnp
from jax.experimental import pallas as pl
from jax.experimental.pallas import tpu as pltpu

# ------------------------- model config (scaled-down rubert-tiny) ------------
VOCAB = 64
MAX_POS = 16
TYPE_VOCAB = 2
HIDDEN = 32
N_LAYERS = 2
N_HEADS = 2
HEAD_DIM = HIDDEN // N_HEADS
INTERMEDIATE = 64
LN_EPS = 1e-12
INIT_STD = 0.02
ATTN_SCALE = 1.0 / math.sqrt(HEAD_DIM)


# ------------------------------ kernel helpers --------------------------------
def _gelu_tanh(x):
    # GELU (tanh approximation) -- matches HF "gelu_new"; close to exact erf gelu.
    return 0.5 * x * (1.0 + jnp.tanh(0.7978845608028654 * (x + 0.044715 * x * x * x)))


def _ln(x, g, b):
    mu = jnp.mean(x, axis=-1, keepdims=True)
    var = jnp.mean(jnp.square(x - mu), axis=-1, keepdims=True)
    return (x - mu) * jax.lax.rsqrt(var + LN_EPS) * g + b


# ------------------------------ fused Pallas kernel ----------------------------
def _fused_encoder_kernel(
    x_ref, bias_ref, emb_g_ref, emb_b_ref,
    wqkv_ref, bqkv_ref, wo_ref, bo_ref,
    ln1_g_ref, ln1_b_ref, w1_ref, b1_ref, w2_ref, b2_ref,
    ln2_g_ref, ln2_b_ref, cls_w_ref, cls_b_ref,
    o_ref,
):
    """One grid step == one batch element.  Entire encoder + pool + classifier."""
    x = x_ref[0]                                   # (S, H)  raw embedding sum
    bias = bias_ref[0]                             # (1, S)  additive attention bias
    x = _ln(x, emb_g_ref[...], emb_b_ref[...])     # embedding LayerNorm

    for l in range(N_LAYERS):                      # static unroll over 2 layers
        # ---- fused QKV projection: single MXU pass with N = 3H ----
        qkv = jnp.dot(x, wqkv_ref[l], preferred_element_type=jnp.float32) + bqkv_ref[l]
        q = qkv[:, 0 * HIDDEN:1 * HIDDEN]
        k = qkv[:, 1 * HIDDEN:2 * HIDDEN]
        v = qkv[:, 2 * HIDDEN:3 * HIDDEN]

        # ---- attention: in-kernel head split via lane slices ----
        wo = wo_ref[l]                             # (H, H)
        attn = None
        for h in range(N_HEADS):                   # static unroll over heads
            c0 = h * HEAD_DIM
            qh = q[:, c0:c0 + HEAD_DIM]            # (S, Dh)
            kh = k[:, c0:c0 + HEAD_DIM]
            vh = v[:, c0:c0 + HEAD_DIM]
            s = jnp.dot(qh, kh.T, preferred_element_type=jnp.float32) * ATTN_SCALE + bias
            m = jnp.max(s, axis=-1, keepdims=True)
            p = jnp.exp(s - m)
            p = p * pl.reciprocal(jnp.sum(p, axis=-1, keepdims=True), approx=True)
            ctx = jnp.dot(p, vh, preferred_element_type=jnp.float32)          # (S, Dh)
            # merge heads by folding into the output projection (ctx @ wo_head)
            contrib = jnp.dot(ctx, wo[c0:c0 + HEAD_DIM, :],
                              preferred_element_type=jnp.float32)             # (S, H)
            attn = contrib if attn is None else attn + contrib
        attn = attn + bo_ref[l]

        # ---- residual + post-LN (fused) ----
        x = _ln(x + attn, ln1_g_ref[l], ln1_b_ref[l])

        # ---- FFN (GELU) + residual + LN (fused) ----
        hmid = _gelu_tanh(jnp.dot(x, w1_ref[l], preferred_element_type=jnp.float32)
                          + b1_ref[l])
        ffn_out = jnp.dot(hmid, w2_ref[l], preferred_element_type=jnp.float32) + b2_ref[l]
        x = _ln(x + ffn_out, ln2_g_ref[l], ln2_b_ref[l])

    # ---- mean pool over sequence + Linear(H, 1) + Sigmoid ----
    pooled = jnp.mean(x, axis=0, keepdims=True)                                # (1, H)
    logit = (jnp.dot(pooled, cls_w_ref[...], preferred_element_type=jnp.float32)
             + cls_b_ref[...])                                                 # (1, 1)
    o_ref[0] = jax.nn.sigmoid(logit)


# ------------------------------ parameters ------------------------------------
def init_params(key):
    ks = iter(jax.random.split(key, 128))
    nrm = lambda shape: INIT_STD * jax.random.normal(next(ks), shape, jnp.float32)
    params = {
        "word_emb": nrm((VOCAB, HIDDEN)),
        "pos_emb": nrm((MAX_POS, HIDDEN)),
        "type_emb": nrm((TYPE_VOCAB, HIDDEN)),
        "emb_ln_g": jnp.ones((HIDDEN,), jnp.float32),
        "emb_ln_b": jnp.zeros((HIDDEN,), jnp.float32),
        "layers": [],
        "cls_w": nrm((HIDDEN, 1)),                 # classifier_profession Linear(H, 1)
        "cls_b": jnp.zeros((1,), jnp.float32),
    }
    for _ in range(N_LAYERS):
        params["layers"].append({
            "wq": nrm((HIDDEN, HIDDEN)), "bq": jnp.zeros((HIDDEN,), jnp.float32),
            "wk": nrm((HIDDEN, HIDDEN)), "bk": jnp.zeros((HIDDEN,), jnp.float32),
            "wv": nrm((HIDDEN, HIDDEN)), "bv": jnp.zeros((HIDDEN,), jnp.float32),
            "wo": nrm((HIDDEN, HIDDEN)), "bo": jnp.zeros((HIDDEN,), jnp.float32),
            "ln1_g": jnp.ones((HIDDEN,), jnp.float32), "ln1_b": jnp.zeros((HIDDEN,), jnp.float32),
            "w1": nrm((HIDDEN, INTERMEDIATE)), "b1": jnp.zeros((INTERMEDIATE,), jnp.float32),
            "w2": nrm((INTERMEDIATE, HIDDEN)), "b2": jnp.zeros((HIDDEN,), jnp.float32),
            "ln2_g": jnp.ones((HIDDEN,), jnp.float32), "ln2_b": jnp.zeros((HIDDEN,), jnp.float32),
        })
    return params


def _stack_layer_params(params):
    """Stack per-layer weights on a leading L axis; fuse QKV weights/biases."""
    L = params["layers"]
    stk = lambda key: jnp.stack([lp[key] for lp in L], axis=0)
    row = lambda key, n: jnp.stack([lp[key].reshape(1, n) for lp in L], axis=0)
    wqkv = jnp.stack(
        [jnp.concatenate([lp["wq"], lp["wk"], lp["wv"]], axis=1) for lp in L], axis=0)
    bqkv = jnp.stack(
        [jnp.concatenate([lp["bq"], lp["bk"], lp["bv"]], axis=0).reshape(1, 3 * HIDDEN)
         for lp in L], axis=0)
    return dict(
        wqkv=wqkv, bqkv=bqkv,
        wo=stk("wo"), bo=row("bo", HIDDEN),
        ln1_g=row("ln1_g", HIDDEN), ln1_b=row("ln1_b", HIDDEN),
        w1=stk("w1"), b1=row("b1", INTERMEDIATE),
        w2=stk("w2"), b2=row("b2", HIDDEN),
        ln2_g=row("ln2_g", HIDDEN), ln2_b=row("ln2_b", HIDDEN),
    )


# ------------------------------ forward pass -----------------------------------
def prof_model_forward(params, input_ids, attention_mask):
    B, S = input_ids.shape
    # embeddings (gather glue in plain JAX); LayerNorm happens inside the kernel
    emb = (params["word_emb"][input_ids]
           + params["pos_emb"][None, :S, :]
           + params["type_emb"][0][None, None, :]).astype(jnp.float32)       # (B, S, H)
    # additive attention bias precomputed once per forward
    attn_bias = ((1.0 - attention_mask.astype(jnp.float32)) * (-1e9)).reshape(B, 1, S)

    w = _stack_layer_params(params)

    spec3 = lambda shp: pl.BlockSpec(shp, lambda b: (0, 0, 0))
    spec2 = lambda shp: pl.BlockSpec(shp, lambda b: (0, 0))

    out = pl.pallas_call(
        _fused_encoder_kernel,
        out_shape=jax.ShapeDtypeStruct((B, 1, 1), jnp.float32),
        grid=(B,),
        in_specs=[
            pl.BlockSpec((1, S, HIDDEN), lambda b: (b, 0, 0)),   # embeddings (per batch)
            pl.BlockSpec((1, 1, S), lambda b: (b, 0, 0)),        # attention bias (per batch)
            spec2((1, HIDDEN)), spec2((1, HIDDEN)),              # embedding LN gamma/beta
            spec3((N_LAYERS, HIDDEN, 3 * HIDDEN)),               # fused QKV weight
            spec3((N_LAYERS, 1, 3 * HIDDEN)),                    # fused QKV bias
            spec3((N_LAYERS, HIDDEN, HIDDEN)),                   # wo
            spec3((N_LAYERS, 1, HIDDEN)),                        # bo
            spec3((N_LAYERS, 1, HIDDEN)), spec3((N_LAYERS, 1, HIDDEN)),          # ln1
            spec3((N_LAYERS, HIDDEN, INTERMEDIATE)),             # w1
            spec3((N_LAYERS, 1, INTERMEDIATE)),                  # b1
            spec3((N_LAYERS, INTERMEDIATE, HIDDEN)),             # w2
            spec3((N_LAYERS, 1, HIDDEN)),                        # b2
            spec3((N_LAYERS, 1, HIDDEN)), spec3((N_LAYERS, 1, HIDDEN)),          # ln2
            spec2((HIDDEN, 1)), spec2((1, 1)),                   # classifier
        ],
        out_specs=pl.BlockSpec((1, 1, 1), lambda b: (b, 0, 0)),
        compiler_params=pltpu.CompilerParams(
            dimension_semantics=("parallel",)),                  # batch -> 2 TCs on v7x
    )(
        emb, attn_bias,
        params["emb_ln_g"].reshape(1, HIDDEN), params["emb_ln_b"].reshape(1, HIDDEN),
        w["wqkv"], w["bqkv"], w["wo"], w["bo"],
        w["ln1_g"], w["ln1_b"], w["w1"], w["b1"], w["w2"], w["b2"],
        w["ln2_g"], w["ln2_b"],
        params["cls_w"], params["cls_b"].reshape(1, 1),
    )
    return out.reshape(B, 1)                                      # (B, 1) probabilities


# ------------------------------ pure-JAX reference ------------------------------
def reference_forward(params, input_ids, attention_mask):
    B, S = input_ids.shape
    emb = (params["word_emb"][input_ids]
           + params["pos_emb"][None, :S, :]
           + params["type_emb"][0][None, None, :]).astype(jnp.float32)

    def ln(x, g, b):
        mu = jnp.mean(x, -1, keepdims=True)
        var = jnp.mean((x - mu) ** 2, -1, keepdims=True)
        return (x - mu) * jax.lax.rsqrt(var + LN_EPS) * g + b

    x = ln(emb, params["emb_ln_g"], params["emb_ln_b"])
    mask = attention_mask.astype(jnp.float32)
    for lp in params["layers"]:
        def proj(t, w, b):
            return (t @ w + b).reshape(B, S, N_HEADS, HEAD_DIM).transpose(0, 2, 1, 3)
        q, k, v = proj(x, lp["wq"], lp["bq"]), proj(x, lp["wk"], lp["bk"]), proj(x, lp["wv"], lp["bv"])
        s = jnp.einsum("bhqd,bhkd->bhqk", q, k) / math.sqrt(HEAD_DIM)
        s = s + (1.0 - mask)[:, None, None, :] * (-1e9)
        p = jax.nn.softmax(s, axis=-1)
        ctx = jnp.einsum("bhqk,bhkd->bhqd", p, v).transpose(0, 2, 1, 3).reshape(B, S, HIDDEN)
        x = ln(x + (ctx @ lp["wo"] + lp["bo"]), lp["ln1_g"], lp["ln1_b"])
        hdn = _gelu_tanh(x @ lp["w1"] + lp["b1"])
        x = ln(x + (hdn @ lp["w2"] + lp["b2"]), lp["ln2_g"], lp["ln2_b"])
    pooled = jnp.mean(x, axis=1)
    return jax.nn.sigmoid(pooled @ params["cls_w"] + params["cls_b"])


# ----------------------------------- main ---------------------------------------
if __name__ == "__main__":
    key = jax.random.PRNGKey(0)
    pkey, ikey = jax.random.split(key)
    params = init_params(pkey)

    B, S = 2, 8
    input_ids = jax.random.randint(ikey, (B, S), 0, VOCAB, dtype=jnp.int32)
    attention_mask = jnp.array([[1, 1, 1, 1, 1, 1, 1, 1],
                                [1, 1, 1, 1, 1, 1, 0, 0]], dtype=jnp.int32)

    fwd = jax.jit(prof_model_forward)
    prob = fwd(params, input_ids, attention_mask)
    prob = jax.block_until_ready(prob)

    ref = reference_forward(params, input_ids, attention_mask)
    assert prob.shape == (B, 1)
    assert jnp.all(jnp.isfinite(prob))
    assert jnp.allclose(prob, ref, rtol=2e-3, atol=2e-3), (prob, ref)

    print("KERNEL_OK")
</pallas_src>

<mosaic_0001>
module attributes {stable_mosaic.version = 11 : i64} {
  func.func @_fused_encoder_kernel(%arg0: i32, %arg1: memref<1x8x32xf32, #tpu.memory_space<vmem>>, %arg2: memref<1x1x8xf32, #tpu.memory_space<vmem>>, %arg3: memref<1x32xf32, #tpu.memory_space<vmem>>, %arg4: memref<1x32xf32, #tpu.memory_space<vmem>>, %arg5: memref<2x32x96xf32, #tpu.memory_space<vmem>>, %arg6: memref<2x1x96xf32, #tpu.memory_space<vmem>>, %arg7: memref<2x32x32xf32, #tpu.memory_space<vmem>>, %arg8: memref<2x1x32xf32, #tpu.memory_space<vmem>>, %arg9: memref<2x1x32xf32, #tpu.memory_space<vmem>>, %arg10: memref<2x1x32xf32, #tpu.memory_space<vmem>>, %arg11: memref<2x32x64xf32, #tpu.memory_space<vmem>>, %arg12: memref<2x1x64xf32, #tpu.memory_space<vmem>>, %arg13: memref<2x64x32xf32, #tpu.memory_space<vmem>>, %arg14: memref<2x1x32xf32, #tpu.memory_space<vmem>>, %arg15: memref<2x1x32xf32, #tpu.memory_space<vmem>>, %arg16: memref<2x1x32xf32, #tpu.memory_space<vmem>>, %arg17: memref<32x1xf32, #tpu.memory_space<vmem>>, %arg18: memref<1x1xf32, #tpu.memory_space<vmem>>, %arg19: memref<1x1x1xf32, #tpu.memory_space<vmem>>) attributes {dimension_semantics = [#tpu.dimension_semantics<parallel>], iteration_bounds = array<i64: 2>, scalar_prefetch = 0 : i64, scratch_operands = 0 : i64, tpu.core_type = #tpu.core_type<tc>, window_params = [{transform_indices = @transform_0, window_bounds = array<i64: 1, 8, 32>}, {transform_indices = @transform_1, window_bounds = array<i64: 1, 1, 8>}, {pipeline_mode = #tpu.pipeline_mode<synchronous>, transform_indices = @transform_2, window_bounds = array<i64: 1, 32>}, {pipeline_mode = #tpu.pipeline_mode<synchronous>, transform_indices = @transform_3, window_bounds = array<i64: 1, 32>}, {pipeline_mode = #tpu.pipeline_mode<synchronous>, transform_indices = @transform_4, window_bounds = array<i64: 2, 32, 96>}, {pipeline_mode = #tpu.pipeline_mode<synchronous>, transform_indices = @transform_5, window_bounds = array<i64: 2, 1, 96>}, {pipeline_mode = #tpu.pipeline_mode<synchronous>, transform_indices = @transform_6, window_bounds = array<i64: 2, 32, 32>}, {pipeline_mode = #tpu.pipeline_mode<synchronous>, transform_indices = @transform_7, window_bounds = array<i64: 2, 1, 32>}, {pipeline_mode = #tpu.pipeline_mode<synchronous>, transform_indices = @transform_8, window_bounds = array<i64: 2, 1, 32>}, {pipeline_mode = #tpu.pipeline_mode<synchronous>, transform_indices = @transform_9, window_bounds = array<i64: 2, 1, 32>}, {pipeline_mode = #tpu.pipeline_mode<synchronous>, transform_indices = @transform_10, window_bounds = array<i64: 2, 32, 64>}, {pipeline_mode = #tpu.pipeline_mode<synchronous>, transform_indices = @transform_11, window_bounds = array<i64: 2, 1, 64>}, {pipeline_mode = #tpu.pipeline_mode<synchronous>, transform_indices = @transform_12, window_bounds = array<i64: 2, 64, 32>}, {pipeline_mode = #tpu.pipeline_mode<synchronous>, transform_indices = @transform_13, window_bounds = array<i64: 2, 1, 32>}, {pipeline_mode = #tpu.pipeline_mode<synchronous>, transform_indices = @transform_14, window_bounds = array<i64: 2, 1, 32>}, {pipeline_mode = #tpu.pipeline_mode<synchronous>, transform_indices = @transform_15, window_bounds = array<i64: 2, 1, 32>}, {pipeline_mode = #tpu.pipeline_mode<synchronous>, transform_indices = @transform_16, window_bounds = array<i64: 32, 1>}, {pipeline_mode = #tpu.pipeline_mode<synchronous>, transform_indices = @transform_17, window_bounds = array<i64: 1, 1>}, {transform_indices = @transform_18, window_bounds = array<i64: 1, 1, 1>}]} {
    %c0 = arith.constant 0 : index
    %c0_0 = arith.constant 0 : index
    %c0_1 = arith.constant 0 : index
    %0 = vector.load %arg1[%c0, %c0_0, %c0_1] : memref<1x8x32xf32, #tpu.memory_space<vmem>>, vector<1x8x32xf32>
    %1 = vector.shape_cast %0 : vector<1x8x32xf32> to vector<8x32xf32>
    %c0_2 = arith.constant 0 : index
    %c0_3 = arith.constant 0 : index
    %c0_4 = arith.constant 0 : index
    %2 = vector.load %arg2[%c0_2, %c0_3, %c0_4] : memref<1x1x8xf32, #tpu.memory_space<vmem>>, vector<1x1x8xf32>
    %3 = vector.shape_cast %2 : vector<1x1x8xf32> to vector<1x8xf32>
    %c0_5 = arith.constant 0 : index
    %c0_6 = arith.constant 0 : index
    %4 = vector.load %arg3[%c0_5, %c0_6] : memref<1x32xf32, #tpu.memory_space<vmem>>, vector<1x32xf32>
    %c0_7 = arith.constant 0 : index
    %c0_8 = arith.constant 0 : index
    %5 = vector.load %arg4[%c0_7, %c0_8] : memref<1x32xf32, #tpu.memory_space<vmem>>, vector<1x32xf32>
    %cst = arith.constant dense<0.000000e+00> : vector<8xf32>
    %6 = vector.multi_reduction <add>, %1, %cst [1] : vector<8x32xf32> to vector<8xf32>
    %7 = vector.shape_cast %6 : vector<8xf32> to vector<8x1xf32>
    %cst_9 = arith.constant 3.200000e+01 : f32
    %8 = vector.broadcast %cst_9 : f32 to vector<8x1xf32>
    %9 = arith.divf %7, %8 : vector<8x1xf32>
    %10 = vector.broadcast %9 : vector<8x1xf32> to vector<8x32xf32>
    %11 = arith.subf %1, %10 : vector<8x32xf32>
    %12 = arith.mulf %11, %11 : vector<8x32xf32>
    %cst_10 = arith.constant dense<0.000000e+00> : vector<8xf32>
    %13 = vector.multi_reduction <add>, %12, %cst_10 [1] : vector<8x32xf32> to vector<8xf32>
    %14 = vector.shape_cast %13 : vector<8xf32> to vector<8x1xf32>
    %cst_11 = arith.constant 3.200000e+01 : f32
    %15 = vector.broadcast %cst_11 : f32 to vector<8x1xf32>
    %16 = arith.divf %14, %15 : vector<8x1xf32>
    %17 = vector.broadcast %9 : vector<8x1xf32> to vector<8x32xf32>
    %18 = arith.subf %1, %17 : vector<8x32xf32>
    %cst_12 = arith.constant 9.99999996E-13 : f32
    %19 = vector.broadcast %cst_12 : f32 to vector<8x1xf32>
    %20 = arith.addf %16, %19 : vector<8x1xf32>
    %21 = math.rsqrt %20 : vector<8x1xf32>
    %22 = vector.broadcast %21 : vector<8x1xf32> to vector<8x32xf32>
    %23 = arith.mulf %18, %22 : vector<8x32xf32>
    %24 = vector.broadcast %4 : vector<1x32xf32> to vector<8x32xf32>
    %25 = arith.mulf %23, %24 : vector<8x32xf32>
    %26 = vector.broadcast %5 : vector<1x32xf32> to vector<8x32xf32>
    %27 = arith.addf %25, %26 : vector<8x32xf32>
    %c0_13 = arith.constant 0 : index
    %c0_14 = arith.constant 0 : index
    %c0_15 = arith.constant 0 : index
    %28 = vector.load %arg5[%c0_13, %c0_14, %c0_15] : memref<2x32x96xf32, #tpu.memory_space<vmem>>, vector<1x32x96xf32>
    %29 = vector.shape_cast %28 : vector<1x32x96xf32> to vector<32x96xf32>
    %cst_16 = arith.constant dense<0.000000e+00> : vector<8x96xf32>
    %30 = tpu.matmul %27, %29, %cst_16 {dimension_numbers = #tpu.dot_dimension_numbers<[1], [0], [0], [1], [0, 0, 1, 1], [], []>} : vector<8x32xf32>, vector<32x96xf32>, vector<8x96xf32> -> vector<8x96xf32>
    %c0_17 = arith.constant 0 : index
    %c0_18 = arith.constant 0 : index
    %c0_19 = arith.constant 0 : index
    %31 = vector.load %arg6[%c0_17, %c0_18, %c0_19] : memref<2x1x96xf32, #tpu.memory_space<vmem>>, vector<1x1x96xf32>
    %32 = vector.shape_cast %31 : vector<1x1x96xf32> to vector<1x96xf32>
    %33 = vector.broadcast %32 : vector<1x96xf32> to vector<8x96xf32>
    %34 = arith.addf %30, %33 : vector<8x96xf32>
    %35 = vector.extract_strided_slice %34 {offsets = [0, 0], sizes = [8, 32], strides = [1, 1]} : vector<8x96xf32> to vector<8x32xf32>
    %36 = vector.extract_strided_slice %34 {offsets = [0, 32], sizes = [8, 32], strides = [1, 1]} : vector<8x96xf32> to vector<8x32xf32>
    %37 = vector.extract_strided_slice %34 {offsets = [0, 64], sizes = [8, 32], strides = [1, 1]} : vector<8x96xf32> to vector<8x32xf32>
    %c0_20 = arith.constant 0 : index
    %c0_21 = arith.constant 0 : index
    %c0_22 = arith.constant 0 : index
    %38 = vector.load %arg7[%c0_20, %c0_21, %c0_22] : memref<2x32x32xf32, #tpu.memory_space<vmem>>, vector<1x32x32xf32>
    %39 = vector.shape_cast %38 : vector<1x32x32xf32> to vector<32x32xf32>
    %40 = vector.extract_strided_slice %35 {offsets = [0, 0], sizes = [8, 16], strides = [1, 1]} : vector<8x32xf32> to vector<8x16xf32>
    %41 = vector.extract_strided_slice %36 {offsets = [0, 0], sizes = [8, 16], strides = [1, 1]} : vector<8x32xf32> to vector<8x16xf32>
    %42 = vector.extract_strided_slice %37 {offsets = [0, 0], sizes = [8, 16], strides = [1, 1]} : vector<8x32xf32> to vector<8x16xf32>
    %43 = tpu.transpose %41, [1, 0] : vector<8x16xf32> -> vector<16x8xf32>
    %cst_23 = arith.constant dense<0.000000e+00> : vector<8x8xf32>
    %44 = tpu.matmul %40, %43, %cst_23 {dimension_numbers = #tpu.dot_dimension_numbers<[1], [0], [0], [1], [0, 0, 1, 1], [], []>} : vector<8x16xf32>, vector<16x8xf32>, vector<8x8xf32> -> vector<8x8xf32>
    %cst_24 = arith.constant 2.500000e-01 : f32
    %45 = vector.broadcast %cst_24 : f32 to vector<8x8xf32>
    %46 = arith.mulf %44, %45 : vector<8x8xf32>
    %47 = vector.broadcast %3 : vector<1x8xf32> to vector<8x8xf32>
    %48 = arith.addf %46, %47 : vector<8x8xf32>
    %cst_25 = arith.constant dense<0xFF800000> : vector<8xf32>
    %49 = vector.multi_reduction <maximumf>, %48, %cst_25 [1] : vector<8x8xf32> to vector<8xf32>
    %50 = vector.shape_cast %49 : vector<8xf32> to vector<8x1xf32>
    %51 = vector.broadcast %50 : vector<8x1xf32> to vector<8x8xf32>
    %52 = arith.subf %48, %51 : vector<8x8xf32>
    %53 = math.exp %52 : vector<8x8xf32>
    %cst_26 = arith.constant dense<0.000000e+00> : vector<8xf32>
    %54 = vector.multi_reduction <add>, %53, %cst_26 [1] : vector<8x8xf32> to vector<8xf32>
    %55 = vector.shape_cast %54 : vector<8xf32> to vector<8x1xf32>
    %56 = tpu.reciprocal %55 {approx = true} : vector<8x1xf32> -> vector<8x1xf32>
    %57 = vector.broadcast %56 : vector<8x1xf32> to vector<8x8xf32>
    %58 = arith.mulf %53, %57 : vector<8x8xf32>
    %cst_27 = arith.constant dense<0.000000e+00> : vector<8x16xf32>
    %59 = tpu.matmul %58, %42, %cst_27 {dimension_numbers = #tpu.dot_dimension_numbers<[1], [0], [0], [1], [0, 0, 1, 1], [], []>} : vector<8x8xf32>, vector<8x16xf32>, vector<8x16xf32> -> vector<8x16xf32>
    %60 = vector.extract_strided_slice %39 {offsets = [0, 0], sizes = [16, 32], strides = [1, 1]} : vector<32x32xf32> to vector<16x32xf32>
    %cst_28 = arith.constant dense<0.000000e+00> : vector<8x32xf32>
    %61 = tpu.matmul %59, %60, %cst_28 {dimension_numbers = #tpu.dot_dimension_numbers<[1], [0], [0], [1], [0, 0, 1, 1], [], []>} : vector<8x16xf32>, vector<16x32xf32>, vector<8x32xf32> -> vector<8x32xf32>
    %62 = vector.extract_strided_slice %35 {offsets = [0, 16], sizes = [8, 16], strides = [1, 1]} : vector<8x32xf32> to vector<8x16xf32>
    %63 = vector.extract_strided_slice %36 {offsets = [0, 16], sizes = [8, 16], strides = [1, 1]} : vector<8x32xf32> to vector<8x16xf32>
    %64 = vector.extract_strided_slice %37 {offsets = [0, 16], sizes = [8, 16], strides = [1, 1]} : vector<8x32xf32> to vector<8x16xf32>
    %65 = tpu.transpose %63, [1, 0] : vector<8x16xf32> -> vector<16x8xf32>
    %cst_29 = arith.constant dense<0.000000e+00> : vector<8x8xf32>
    %66 = tpu.matmul %62, %65, %cst_29 {dimension_numbers = #tpu.dot_dimension_numbers<[1], [0], [0], [1], [0, 0, 1, 1], [], []>} : vector<8x16xf32>, vector<16x8xf32>, vector<8x8xf32> -> vector<8x8xf32>
    %cst_30 = arith.constant 2.500000e-01 : f32
    %67 = vector.broadcast %cst_30 : f32 to vector<8x8xf32>
    %68 = arith.mulf %66, %67 : vector<8x8xf32>
    %69 = vector.broadcast %3 : vector<1x8xf32> to vector<8x8xf32>
    %70 = arith.addf %68, %69 : vector<8x8xf32>
    %cst_31 = arith.constant dense<0xFF800000> : vector<8xf32>
    %71 = vector.multi_reduction <maximumf>, %70, %cst_31 [1] : vector<8x8xf32> to vector<8xf32>
    %72 = vector.shape_cast %71 : vector<8xf32> to vector<8x1xf32>
    %73 = vector.broadcast %72 : vector<8x1xf32> to vector<8x8xf32>
    %74 = arith.subf %70, %73 : vector<8x8xf32>
    %75 = math.exp %74 : vector<8x8xf32>
    %cst_32 = arith.constant dense<0.000000e+00> : vector<8xf32>
    %76 = vector.multi_reduction <add>, %75, %cst_32 [1] : vector<8x8xf32> to vector<8xf32>
    %77 = vector.shape_cast %76 : vector<8xf32> to vector<8x1xf32>
    %78 = tpu.reciprocal %77 {approx = true} : vector<8x1xf32> -> vector<8x1xf32>
    %79 = vector.broadcast %78 : vector<8x1xf32> to vector<8x8xf32>
    %80 = arith.mulf %75, %79 : vector<8x8xf32>
    %cst_33 = arith.constant dense<0.000000e+00> : vector<8x16xf32>
    %81 = tpu.matmul %80, %64, %cst_33 {dimension_numbers = #tpu.dot_dimension_numbers<[1], [0], [0], [1], [0, 0, 1, 1], [], []>} : vector<8x8xf32>, vector<8x16xf32>, vector<8x16xf32> -> vector<8x16xf32>
    %82 = vector.extract_strided_slice %39 {offsets = [16, 0], sizes = [16, 32], strides = [1, 1]} : vector<32x32xf32> to vector<16x32xf32>
    %cst_34 = arith.constant dense<0.000000e+00> : vector<8x32xf32>
    %83 = tpu.matmul %81, %82, %cst_34 {dimension_numbers = #tpu.dot_dimension_numbers<[1], [0], [0], [1], [0, 0, 1, 1], [], []>} : vector<8x16xf32>, vector<16x32xf32>, vector<8x32xf32> -> vector<8x32xf32>
    %84 = arith.addf %61, %83 : vector<8x32xf32>
    %c0_35 = arith.constant 0 : index
    %c0_36 = arith.constant 0 : index
    %c0_37 = arith.constant 0 : index
    %85 = vector.load %arg8[%c0_35, %c0_36, %c0_37] : memref<2x1x32xf32, #tpu.memory_space<vmem>>, vector<1x1x32xf32>
    %86 = vector.shape_cast %85 : vector<1x1x32xf32> to vector<1x32xf32>
    %87 = vector.broadcast %86 : vector<1x32xf32> to vector<8x32xf32>
    %88 = arith.addf %84, %87 : vector<8x32xf32>
    %89 = arith.addf %27, %88 : vector<8x32xf32>
    %c0_38 = arith.constant 0 : index
    %c0_39 = arith.constant 0 : index
    %c0_40 = arith.constant 0 : index
    %90 = vector.load %arg9[%c0_38, %c0_39, %c0_40] : memref<2x1x32xf32, #tpu.memory_space<vmem>>, vector<1x1x32xf32>
    %91 = vector.shape_cast %90 : vector<1x1x32xf32> to vector<1x32xf32>
    %c0_41 = arith.constant 0 : index
    %c0_42 = arith.constant 0 : index
    %c0_43 = arith.constant 0 : index
    %92 = vector.load %arg10[%c0_41, %c0_42, %c0_43] : memref<2x1x32xf32, #tpu.memory_space<vmem>>, vector<1x1x32xf32>
    %93 = vector.shape_cast %92 : vector<1x1x32xf32> to vector<1x32xf32>
    %cst_44 = arith.constant dense<0.000000e+00> : vector<8xf32>
    %94 = vector.multi_reduction <add>, %89, %cst_44 [1] : vector<8x32xf32> to vector<8xf32>
    %95 = vector.shape_cast %94 : vector<8xf32> to vector<8x1xf32>
    %cst_45 = arith.constant 3.200000e+01 : f32
    %96 = vector.broadcast %cst_45 : f32 to vector<8x1xf32>
    %97 = arith.divf %95, %96 : vector<8x1xf32>
    %98 = vector.broadcast %97 : vector<8x1xf32> to vector<8x32xf32>
    %99 = arith.subf %89, %98 : vector<8x32xf32>
    %100 = arith.mulf %99, %99 : vector<8x32xf32>
    %cst_46 = arith.constant dense<0.000000e+00> : vector<8xf32>
    %101 = vector.multi_reduction <add>, %100, %cst_46 [1] : vector<8x32xf32> to vector<8xf32>
    %102 = vector.shape_cast %101 : vector<8xf32> to vector<8x1xf32>
    %cst_47 = arith.constant 3.200000e+01 : f32
    %103 = vector.broadcast %cst_47 : f32 to vector<8x1xf32>
    %104 = arith.divf %102, %103 : vector<8x1xf32>
    %105 = vector.broadcast %97 : vector<8x1xf32> to vector<8x32xf32>
    %106 = arith.subf %89, %105 : vector<8x32xf32>
    %cst_48 = arith.constant 9.99999996E-13 : f32
    %107 = vector.broadcast %cst_48 : f32 to vector<8x1xf32>
    %108 = arith.addf %104, %107 : vector<8x1xf32>
    %109 = math.rsqrt %108 : vector<8x1xf32>
    %110 = vector.broadcast %109 : vector<8x1xf32> to vector<8x32xf32>
    %111 = arith.mulf %106, %110 : vector<8x32xf32>
    %112 = vector.broadcast %91 : vector<1x32xf32> to vector<8x32xf32>
    %113 = arith.mulf %111, %112 : vector<8x32xf32>
    %114 = vector.broadcast %93 : vector<1x32xf32> to vector<8x32xf32>
    %115 = arith.addf %113, %114 : vector<8x32xf32>
    %c0_49 = arith.constant 0 : index
    %c0_50 = arith.constant 0 : index
    %c0_51 = arith.constant 0 : index
    %116 = vector.load %arg11[%c0_49, %c0_50, %c0_51] : memref<2x32x64xf32, #tpu.memory_space<vmem>>, vector<1x32x64xf32>
    %117 = vector.shape_cast %116 : vector<1x32x64xf32> to vector<32x64xf32>
    %cst_52 = arith.constant dense<0.000000e+00> : vector<8x64xf32>
    %118 = tpu.matmul %115, %117, %cst_52 {dimension_numbers = #tpu.dot_dimension_numbers<[1], [0], [0], [1], [0, 0, 1, 1], [], []>} : vector<8x32xf32>, vector<32x64xf32>, vector<8x64xf32> -> vector<8x64xf32>
    %c0_53 = arith.constant 0 : index
    %c0_54 = arith.constant 0 : index
    %c0_55 = arith.constant 0 : index
    %119 = vector.load %arg12[%c0_53, %c0_54, %c0_55] : memref<2x1x64xf32, #tpu.memory_space<vmem>>, vector<1x1x64xf32>
    %120 = vector.shape_cast %119 : vector<1x1x64xf32> to vector<1x64xf32>
    %121 = vector.broadcast %120 : vector<1x64xf32> to vector<8x64xf32>
    %122 = arith.addf %118, %121 : vector<8x64xf32>
    %cst_56 = arith.constant 5.000000e-01 : f32
    %123 = vector.broadcast %cst_56 : f32 to vector<8x64xf32>
    %124 = arith.mulf %123, %122 : vector<8x64xf32>
    %cst_57 = arith.constant 4.471500e-02 : f32
    %125 = vector.broadcast %cst_57 : f32 to vector<8x64xf32>
    %126 = arith.mulf %125, %122 : vector<8x64xf32>
    %127 = arith.mulf %126, %122 : vector<8x64xf32>
    %128 = arith.mulf %127, %122 : vector<8x64xf32>
    %129 = arith.addf %122, %128 : vector<8x64xf32>
    %cst_58 = arith.constant 0.797884583 : f32
    %130 = vector.broadcast %cst_58 : f32 to vector<8x64xf32>
    %131 = arith.mulf %130, %129 : vector<8x64xf32>
    %132 = math.tanh %131 : vector<8x64xf32>
    %cst_59 = arith.constant 1.000000e+00 : f32
    %133 = vector.broadcast %cst_59 : f32 to vector<8x64xf32>
    %134 = arith.addf %133, %132 : vector<8x64xf32>
    %135 = arith.mulf %124, %134 : vector<8x64xf32>
    %c0_60 = arith.constant 0 : index
    %c0_61 = arith.constant 0 : index
    %c0_62 = arith.constant 0 : index
    %136 = vector.load %arg13[%c0_60, %c0_61, %c0_62] : memref<2x64x32xf32, #tpu.memory_space<vmem>>, vector<1x64x32xf32>
    %137 = vector.shape_cast %136 : vector<1x64x32xf32> to vector<64x32xf32>
    %cst_63 = arith.constant dense<0.000000e+00> : vector<8x32xf32>
    %138 = tpu.matmul %135, %137, %cst_63 {dimension_numbers = #tpu.dot_dimension_numbers<[1], [0], [0], [1], [0, 0, 1, 1], [], []>} : vector<8x64xf32>, vector<64x32xf32>, vector<8x32xf32> -> vector<8x32xf32>
    %c0_64 = arith.constant 0 : index
    %c0_65 = arith.constant 0 : index
    %c0_66 = arith.constant 0 : index
    %139 = vector.load %arg14[%c0_64, %c0_65, %c0_66] : memref<2x1x32xf32, #tpu.memory_space<vmem>>, vector<1x1x32xf32>
    %140 = vector.shape_cast %139 : vector<1x1x32xf32> to vector<1x32xf32>
    %141 = vector.broadcast %140 : vector<1x32xf32> to vector<8x32xf32>
    %142 = arith.addf %138, %141 : vector<8x32xf32>
    %143 = arith.addf %115, %142 : vector<8x32xf32>
    %c0_67 = arith.constant 0 : index
    %c0_68 = arith.constant 0 : index
    %c0_69 = arith.constant 0 : index
    %144 = vector.load %arg15[%c0_67, %c0_68, %c0_69] : memref<2x1x32xf32, #tpu.memory_space<vmem>>, vector<1x1x32xf32>
    %145 = vector.shape_cast %144 : vector<1x1x32xf32> to vector<1x32xf32>
    %c0_70 = arith.constant 0 : index
    %c0_71 = arith.constant 0 : index
    %c0_72 = arith.constant 0 : index
    %146 = vector.load %arg16[%c0_70, %c0_71, %c0_72] : memref<2x1x32xf32, #tpu.memory_space<vmem>>, vector<1x1x32xf32>
    %147 = vector.shape_cast %146 : vector<1x1x32xf32> to vector<1x32xf32>
    %cst_73 = arith.constant dense<0.000000e+00> : vector<8xf32>
    %148 = vector.multi_reduction <add>, %143, %cst_73 [1] : vector<8x32xf32> to vector<8xf32>
    %149 = vector.shape_cast %148 : vector<8xf32> to vector<8x1xf32>
    %cst_74 = arith.constant 3.200000e+01 : f32
    %150 = vector.broadcast %cst_74 : f32 to vector<8x1xf32>
    %151 = arith.divf %149, %150 : vector<8x1xf32>
    %152 = vector.broadcast %151 : vector<8x1xf32> to vector<8x32xf32>
    %153 = arith.subf %143, %152 : vector<8x32xf32>
    %154 = arith.mulf %153, %153 : vector<8x32xf32>
    %cst_75 = arith.constant dense<0.000000e+00> : vector<8xf32>
    %155 = vector.multi_reduction <add>, %154, %cst_75 [1] : vector<8x32xf32> to vector<8xf32>
    %156 = vector.shape_cast %155 : vector<8xf32> to vector<8x1xf32>
    %cst_76 = arith.constant 3.200000e+01 : f32
    %157 = vector.broadcast %cst_76 : f32 to vector<8x1xf32>
    %158 = arith.divf %156, %157 : vector<8x1xf32>
    %159 = vector.broadcast %151 : vector<8x1xf32> to vector<8x32xf32>
    %160 = arith.subf %143, %159 : vector<8x32xf32>
    %cst_77 = arith.constant 9.99999996E-13 : f32
    %161 = vector.broadcast %cst_77 : f32 to vector<8x1xf32>
    %162 = arith.addf %158, %161 : vector<8x1xf32>
    %163 = math.rsqrt %162 : vector<8x1xf32>
    %164 = vector.broadcast %163 : vector<8x1xf32> to vector<8x32xf32>
    %165 = arith.mulf %160, %164 : vector<8x32xf32>
    %166 = vector.broadcast %145 : vector<1x32xf32> to vector<8x32xf32>
    %167 = arith.mulf %165, %166 : vector<8x32xf32>
    %168 = vector.broadcast %147 : vector<1x32xf32> to vector<8x32xf32>
    %169 = arith.addf %167, %168 : vector<8x32xf32>
    %c1 = arith.constant 1 : index
    %c0_78 = arith.constant 0 : index
    %c0_79 = arith.constant 0 : index
    %170 = vector.load %arg5[%c1, %c0_78, %c0_79] : memref<2x32x96xf32, #tpu.memory_space<vmem>>, vector<1x32x96xf32>
    %171 = vector.shape_cast %170 : vector<1x32x96xf32> to vector<32x96xf32>
    %cst_80 = arith.constant dense<0.000000e+00> : vector<8x96xf32>
    %172 = tpu.matmul %169, %171, %cst_80 {dimension_numbers = #tpu.dot_dimension_numbers<[1], [0], [0], [1], [0, 0, 1, 1], [], []>} : vector<8x32xf32>, vector<32x96xf32>, vector<8x96xf32> -> vector<8x96xf32>
    %c1_81 = arith.constant 1 : index
    %c0_82 = arith.constant 0 : index
    %c0_83 = arith.constant 0 : index
    %173 = vector.load %arg6[%c1_81, %c0_82, %c0_83] : memref<2x1x96xf32, #tpu.memory_space<vmem>>, vector<1x1x96xf32>
    %174 = vector.shape_cast %173 : vector<1x1x96xf32> to vector<1x96xf32>
    %175 = vector.broadcast %174 : vector<1x96xf32> to vector<8x96xf32>
    %176 = arith.addf %172, %175 : vector<8x96xf32>
    %177 = vector.extract_strided_slice %176 {offsets = [0, 0], sizes = [8, 32], strides = [1, 1]} : vector<8x96xf32> to vector<8x32xf32>
    %178 = vector.extract_strided_slice %176 {offsets = [0, 32], sizes = [8, 32], strides = [1, 1]} : vector<8x96xf32> to vector<8x32xf32>
    %179 = vector.extract_strided_slice %176 {offsets = [0, 64], sizes = [8, 32], strides = [1, 1]} : vector<8x96xf32> to vector<8x32xf32>
    %c1_84 = arith.constant 1 : index
    %c0_85 = arith.constant 0 : index
    %c0_86 = arith.constant 0 : index
    %180 = vector.load %arg7[%c1_84, %c0_85, %c0_86] : memref<2x32x32xf32, #tpu.memory_space<vmem>>, vector<1x32x32xf32>
    %181 = vector.shape_cast %180 : vector<1x32x32xf32> to vector<32x32xf32>
    %182 = vector.extract_strided_slice %177 {offsets = [0, 0], sizes = [8, 16], strides = [1, 1]} : vector<8x32xf32> to vector<8x16xf32>
    %183 = vector.extract_strided_slice %178 {offsets = [0, 0], sizes = [8, 16], strides = [1, 1]} : vector<8x32xf32> to vector<8x16xf32>
    %184 = vector.extract_strided_slice %179 {offsets = [0, 0], sizes = [8, 16], strides = [1, 1]} : vector<8x32xf32> to vector<8x16xf32>
    %185 = tpu.transpose %183, [1, 0] : vector<8x16xf32> -> vector<16x8xf32>
    %cst_87 = arith.constant dense<0.000000e+00> : vector<8x8xf32>
    %186 = tpu.matmul %182, %185, %cst_87 {dimension_numbers = #tpu.dot_dimension_numbers<[1], [0], [0], [1], [0, 0, 1, 1], [], []>} : vector<8x16xf32>, vector<16x8xf32>, vector<8x8xf32> -> vector<8x8xf32>
    %cst_88 = arith.constant 2.500000e-01 : f32
    %187 = vector.broadcast %cst_88 : f32 to vector<8x8xf32>
    %188 = arith.mulf %186, %187 : vector<8x8xf32>
    %189 = vector.broadcast %3 : vector<1x8xf32> to vector<8x8xf32>
    %190 = arith.addf %188, %189 : vector<8x8xf32>
    %cst_89 = arith.constant dense<0xFF800000> : vector<8xf32>
    %191 = vector.multi_reduction <maximumf>, %190, %cst_89 [1] : vector<8x8xf32> to vector<8xf32>
    %192 = vector.shape_cast %191 : vector<8xf32> to vector<8x1xf32>
    %193 = vector.broadcast %192 : vector<8x1xf32> to vector<8x8xf32>
    %194 = arith.subf %190, %193 : vector<8x8xf32>
    %195 = math.exp %194 : vector<8x8xf32>
    %cst_90 = arith.constant dense<0.000000e+00> : vector<8xf32>
    %196 = vector.multi_reduction <add>, %195, %cst_90 [1] : vector<8x8xf32> to vector<8xf32>
    %197 = vector.shape_cast %196 : vector<8xf32> to vector<8x1xf32>
    %198 = tpu.reciprocal %197 {approx = true} : vector<8x1xf32> -> vector<8x1xf32>
    %199 = vector.broadcast %198 : vector<8x1xf32> to vector<8x8xf32>
    %200 = arith.mulf %195, %199 : vector<8x8xf32>
    %cst_91 = arith.constant dense<0.000000e+00> : vector<8x16xf32>
    %201 = tpu.matmul %200, %184, %cst_91 {dimension_numbers = #tpu.dot_dimension_numbers<[1], [0], [0], [1], [0, 0, 1, 1], [], []>} : vector<8x8xf32>, vector<8x16xf32>, vector<8x16xf32> -> vector<8x16xf32>
    %202 = vector.extract_strided_slice %181 {offsets = [0, 0], sizes = [16, 32], strides = [1, 1]} : vector<32x32xf32> to vector<16x32xf32>
    %cst_92 = arith.constant dense<0.000000e+00> : vector<8x32xf32>
    %203 = tpu.matmul %201, %202, %cst_92 {dimension_numbers = #tpu.dot_dimension_numbers<[1], [0], [0], [1], [0, 0, 1, 1], [], []>} : vector<8x16xf32>, vector<16x32xf32>, vector<8x32xf32> -> vector<8x32xf32>
    %204 = vector.extract_strided_slice %177 {offsets = [0, 16], sizes = [8, 16], strides = [1, 1]} : vector<8x32xf32> to vector<8x16xf32>
    %205 = vector.extract_strided_slice %178 {offsets = [0, 16], sizes = [8, 16], strides = [1, 1]} : vector<8x32xf32> to vector<8x16xf32>
    %206 = vector.extract_strided_slice %179 {offsets = [0, 16], sizes = [8, 16], strides = [1, 1]} : vector<8x32xf32> to vector<8x16xf32>
    %207 = tpu.transpose %205, [1, 0] : vector<8x16xf32> -> vector<16x8xf32>
    %cst_93 = arith.constant dense<0.000000e+00> : vector<8x8xf32>
    %208 = tpu.matmul %204, %207, %cst_93 {dimension_numbers = #tpu.dot_dimension_numbers<[1], [0], [0], [1], [0, 0, 1, 1], [], []>} : vector<8x16xf32>, vector<16x8xf32>, vector<8x8xf32> -> vector<8x8xf32>
    %cst_94 = arith.constant 2.500000e-01 : f32
    %209 = vector.broadcast %cst_94 : f32 to vector<8x8xf32>
    %210 = arith.mulf %208, %209 : vector<8x8xf32>
    %211 = vector.broadcast %3 : vector<1x8xf32> to vector<8x8xf32>
    %212 = arith.addf %210, %211 : vector<8x8xf32>
    %cst_95 = arith.constant dense<0xFF800000> : vector<8xf32>
    %213 = vector.multi_reduction <maximumf>, %212, %cst_95 [1] : vector<8x8xf32> to vector<8xf32>
    %214 = vector.shape_cast %213 : vector<8xf32> to vector<8x1xf32>
    %215 = vector.broadcast %214 : vector<8x1xf32> to vector<8x8xf32>
    %216 = arith.subf %212, %215 : vector<8x8xf32>
    %217 = math.exp %216 : vector<8x8xf32>
    %cst_96 = arith.constant dense<0.000000e+00> : vector<8xf32>
    %218 = vector.multi_reduction <add>, %217, %cst_96 [1] : vector<8x8xf32> to vector<8xf32>
    %219 = vector.shape_cast %218 : vector<8xf32> to vector<8x1xf32>
    %220 = tpu.reciprocal %219 {approx = true} : vector<8x1xf32> -> vector<8x1xf32>
    %221 = vector.broadcast %220 : vector<8x1xf32> to vector<8x8xf32>
    %222 = arith.mulf %217, %221 : vector<8x8xf32>
    %cst_97 = arith.constant dense<0.000000e+00> : vector<8x16xf32>
    %223 = tpu.matmul %222, %206, %cst_97 {dimension_numbers = #tpu.dot_dimension_numbers<[1], [0], [0], [1], [0, 0, 1, 1], [], []>} : vector<8x8xf32>, vector<8x16xf32>, vector<8x16xf32> -> vector<8x16xf32>
    %224 = vector.extract_strided_slice %181 {offsets = [16, 0], sizes = [16, 32], strides = [1, 1]} : vector<32x32xf32> to vector<16x32xf32>
    %cst_98 = arith.constant dense<0.000000e+00> : vector<8x32xf32>
    %225 = tpu.matmul %223, %224, %cst_98 {dimension_numbers = #tpu.dot_dimension_numbers<[1], [0], [0], [1], [0, 0, 1, 1], [], []>} : vector<8x16xf32>, vector<16x32xf32>, vector<8x32xf32> -> vector<8x32xf32>
    %226 = arith.addf %203, %225 : vector<8x32xf32>
    %c1_99 = arith.constant 1 : index
    %c0_100 = arith.constant 0 : index
    %c0_101 = arith.constant 0 : index
    %227 = vector.load %arg8[%c1_99, %c0_100, %c0_101] : memref<2x1x32xf32, #tpu.memory_space<vmem>>, vector<1x1x32xf32>
    %228 = vector.shape_cast %227 : vector<1x1x32xf32> to vector<1x32xf32>
    %229 = vector.broadcast %228 : vector<1x32xf32> to vector<8x32xf32>
    %230 = arith.addf %226, %229 : vector<8x32xf32>
    %231 = arith.addf %169, %230 : vector<8x32xf32>
    %c1_102 = arith.constant 1 : index
    %c0_103 = arith.constant 0 : index
    %c0_104 = arith.constant 0 : index
    %232 = vector.load %arg9[%c1_102, %c0_103, %c0_104] : memref<2x1x32xf32, #tpu.memory_space<vmem>>, vector<1x1x32xf32>
    %233 = vector.shape_cast %232 : vector<1x1x32xf32> to vector<1x32xf32>
    %c1_105 = arith.constant 1 : index
    %c0_106 = arith.constant 0 : index
    %c0_107 = arith.constant 0 : index
    %234 = vector.load %arg10[%c1_105, %c0_106, %c0_107] : memref<2x1x32xf32, #tpu.memory_space<vmem>>, vector<1x1x32xf32>
    %235 = vector.shape_cast %234 : vector<1x1x32xf32> to vector<1x32xf32>
    %cst_108 = arith.constant dense<0.000000e+00> : vector<8xf32>
    %236 = vector.multi_reduction <add>, %231, %cst_108 [1] : vector<8x32xf32> to vector<8xf32>
    %237 = vector.shape_cast %236 : vector<8xf32> to vector<8x1xf32>
    %cst_109 = arith.constant 3.200000e+01 : f32
    %238 = vector.broadcast %cst_109 : f32 to vector<8x1xf32>
    %239 = arith.divf %237, %238 : vector<8x1xf32>
    %240 = vector.broadcast %239 : vector<8x1xf32> to vector<8x32xf32>
    %241 = arith.subf %231, %240 : vector<8x32xf32>
    %242 = arith.mulf %241, %241 : vector<8x32xf32>
    %cst_110 = arith.constant dense<0.000000e+00> : vector<8xf32>
    %243 = vector.multi_reduction <add>, %242, %cst_110 [1] : vector<8x32xf32> to vector<8xf32>
    %244 = vector.shape_cast %243 : vector<8xf32> to vector<8x1xf32>
    %cst_111 = arith.constant 3.200000e+01 : f32
    %245 = vector.broadcast %cst_111 : f32 to vector<8x1xf32>
    %246 = arith.divf %244, %245 : vector<8x1xf32>
    %247 = vector.broadcast %239 : vector<8x1xf32> to vector<8x32xf32>
    %248 = arith.subf %231, %247 : vector<8x32xf32>
    %cst_112 = arith.constant 9.99999996E-13 : f32
    %249 = vector.broadcast %cst_112 : f32 to vector<8x1xf32>
    %250 = arith.addf %246, %249 : vector<8x1xf32>
    %251 = math.rsqrt %250 : vector<8x1xf32>
    %252 = vector.broadcast %251 : vector<8x1xf32> to vector<8x32xf32>
    %253 = arith.mulf %248, %252 : vector<8x32xf32>
    %254 = vector.broadcast %233 : vector<1x32xf32> to vector<8x32xf32>
    %255 = arith.mulf %253, %254 : vector<8x32xf32>
    %256 = vector.broadcast %235 : vector<1x32xf32> to vector<8x32xf32>
    %257 = arith.addf %255, %256 : vector<8x32xf32>
    %c1_113 = arith.constant 1 : index
    %c0_114 = arith.constant 0 : index
    %c0_115 = arith.constant 0 : index
    %258 = vector.load %arg11[%c1_113, %c0_114, %c0_115] : memref<2x32x64xf32, #tpu.memory_space<vmem>>, vector<1x32x64xf32>
    %259 = vector.shape_cast %258 : vector<1x32x64xf32> to vector<32x64xf32>
    %cst_116 = arith.constant dense<0.000000e+00> : vector<8x64xf32>
    %260 = tpu.matmul %257, %259, %cst_116 {dimension_numbers = #tpu.dot_dimension_numbers<[1], [0], [0], [1], [0, 0, 1, 1], [], []>} : vector<8x32xf32>, vector<32x64xf32>, vector<8x64xf32> -> vector<8x64xf32>
    %c1_117 = arith.constant 1 : index
    %c0_118 = arith.constant 0 : index
    %c0_119 = arith.constant 0 : index
    %261 = vector.load %arg12[%c1_117, %c0_118, %c0_119] : memref<2x1x64xf32, #tpu.memory_space<vmem>>, vector<1x1x64xf32>
    %262 = vector.shape_cast %261 : vector<1x1x64xf32> to vector<1x64xf32>
    %263 = vector.broadcast %262 : vector<1x64xf32> to vector<8x64xf32>
    %264 = arith.addf %260, %263 : vector<8x64xf32>
    %cst_120 = arith.constant 5.000000e-01 : f32
    %265 = vector.broadcast %cst_120 : f32 to vector<8x64xf32>
    %266 = arith.mulf %265, %264 : vector<8x64xf32>
    %cst_121 = arith.constant 4.471500e-02 : f32
    %267 = vector.broadcast %cst_121 : f32 to vector<8x64xf32>
    %268 = arith.mulf %267, %264 : vector<8x64xf32>
    %269 = arith.mulf %268, %264 : vector<8x64xf32>
    %270 = arith.mulf %269, %264 : vector<8x64xf32>
    %271 = arith.addf %264, %270 : vector<8x64xf32>
    %cst_122 = arith.constant 0.797884583 : f32
    %272 = vector.broadcast %cst_122 : f32 to vector<8x64xf32>
    %273 = arith.mulf %272, %271 : vector<8x64xf32>
    %274 = math.tanh %273 : vector<8x64xf32>
    %cst_123 = arith.constant 1.000000e+00 : f32
    %275 = vector.broadcast %cst_123 : f32 to vector<8x64xf32>
    %276 = arith.addf %275, %274 : vector<8x64xf32>
    %277 = arith.mulf %266, %276 : vector<8x64xf32>
    %c1_124 = arith.constant 1 : index
    %c0_125 = arith.constant 0 : index
    %c0_126 = arith.constant 0 : index
    %278 = vector.load %arg13[%c1_124, %c0_125, %c0_126] : memref<2x64x32xf32, #tpu.memory_space<vmem>>, vector<1x64x32xf32>
    %279 = vector.shape_cast %278 : vector<1x64x32xf32> to vector<64x32xf32>
    %cst_127 = arith.constant dense<0.000000e+00> : vector<8x32xf32>
    %280 = tpu.matmul %277, %279, %cst_127 {dimension_numbers = #tpu.dot_dimension_numbers<[1], [0], [0], [1], [0, 0, 1, 1], [], []>} : vector<8x64xf32>, vector<64x32xf32>, vector<8x32xf32> -> vector<8x32xf32>
    %c1_128 = arith.constant 1 : index
    %c0_129 = arith.constant 0 : index
    %c0_130 = arith.constant 0 : index
    %281 = vector.load %arg14[%c1_128, %c0_129, %c0_130] : memref<2x1x32xf32, #tpu.memory_space<vmem>>, vector<1x1x32xf32>
    %282 = vector.shape_cast %281 : vector<1x1x32xf32> to vector<1x32xf32>
    %283 = vector.broadcast %282 : vector<1x32xf32> to vector<8x32xf32>
    %284 = arith.addf %280, %283 : vector<8x32xf32>
    %285 = arith.addf %257, %284 : vector<8x32xf32>
    %c1_131 = arith.constant 1 : index
    %c0_132 = arith.constant 0 : index
    %c0_133 = arith.constant 0 : index
    %286 = vector.load %arg15[%c1_131, %c0_132, %c0_133] : memref<2x1x32xf32, #tpu.memory_space<vmem>>, vector<1x1x32xf32>
    %287 = vector.shape_cast %286 : vector<1x1x32xf32> to vector<1x32xf32>
    %c1_134 = arith.constant 1 : index
    %c0_135 = arith.constant 0 : index
    %c0_136 = arith.constant 0 : index
    %288 = vector.load %arg16[%c1_134, %c0_135, %c0_136] : memref<2x1x32xf32, #tpu.memory_space<vmem>>, vector<1x1x32xf32>
    %289 = vector.shape_cast %288 : vector<1x1x32xf32> to vector<1x32xf32>
    %cst_137 = arith.constant dense<0.000000e+00> : vector<8xf32>
    %290 = vector.multi_reduction <add>, %285, %cst_137 [1] : vector<8x32xf32> to vector<8xf32>
    %291 = vector.shape_cast %290 : vector<8xf32> to vector<8x1xf32>
    %cst_138 = arith.constant 3.200000e+01 : f32
    %292 = vector.broadcast %cst_138 : f32 to vector<8x1xf32>
    %293 = arith.divf %291, %292 : vector<8x1xf32>
    %294 = vector.broadcast %293 : vector<8x1xf32> to vector<8x32xf32>
    %295 = arith.subf %285, %294 : vector<8x32xf32>
    %296 = arith.mulf %295, %295 : vector<8x32xf32>
    %cst_139 = arith.constant dense<0.000000e+00> : vector<8xf32>
    %297 = vector.multi_reduction <add>, %296, %cst_139 [1] : vector<8x32xf32> to vector<8xf32>
    %298 = vector.shape_cast %297 : vector<8xf32> to vector<8x1xf32>
    %cst_140 = arith.constant 3.200000e+01 : f32
    %299 = vector.broadcast %cst_140 : f32 to vector<8x1xf32>
    %300 = arith.divf %298, %299 : vector<8x1xf32>
    %301 = vector.broadcast %293 : vector<8x1xf32> to vector<8x32xf32>
    %302 = arith.subf %285, %301 : vector<8x32xf32>
    %cst_141 = arith.constant 9.99999996E-13 : f32
    %303 = vector.broadcast %cst_141 : f32 to vector<8x1xf32>
    %304 = arith.addf %300, %303 : vector<8x1xf32>
    %305 = math.rsqrt %304 : vector<8x1xf32>
    %306 = vector.broadcast %305 : vector<8x1xf32> to vector<8x32xf32>
    %307 = arith.mulf %302, %306 : vector<8x32xf32>
    %308 = vector.broadcast %287 : vector<1x32xf32> to vector<8x32xf32>
    %309 = arith.mulf %307, %308 : vector<8x32xf32>
    %310 = vector.broadcast %289 : vector<1x32xf32> to vector<8x32xf32>
    %311 = arith.addf %309, %310 : vector<8x32xf32>
    %cst_142 = arith.constant dense<0.000000e+00> : vector<32xf32>
    %312 = vector.multi_reduction <add>, %311, %cst_142 [0] : vector<8x32xf32> to vector<32xf32>
    %313 = vector.shape_cast %312 : vector<32xf32> to vector<1x32xf32>
    %cst_143 = arith.constant 8.000000e+00 : f32
    %314 = vector.broadcast %cst_143 : f32 to vector<1x32xf32>
    %315 = arith.divf %313, %314 : vector<1x32xf32>
    %c0_144 = arith.constant 0 : index
    %c0_145 = arith.constant 0 : index
    %316 = vector.load %arg17[%c0_144, %c0_145] : memref<32x1xf32, #tpu.memory_space<vmem>>, vector<32x1xf32>
    %cst_146 = arith.constant dense<0.000000e+00> : vector<1x1xf32>
    %317 = tpu.matmul %315, %316, %cst_146 {dimension_numbers = #tpu.dot_dimension_numbers<[1], [0], [0], [1], [0, 0, 1, 1], [], []>} : vector<1x32xf32>, vector<32x1xf32>, vector<1x1xf32> -> vector<1x1xf32>
    %c0_147 = arith.constant 0 : index
    %c0_148 = arith.constant 0 : index
    %318 = vector.load %arg18[%c0_147, %c0_148] : memref<1x1xf32, #tpu.memory_space<vmem>>, vector<1x1xf32>
    %319 = arith.addf %317, %318 : vector<1x1xf32>
    %320 = arith.negf %319 : vector<1x1xf32>
    %321 = math.exp %320 : vector<1x1xf32>
    %cst_149 = arith.constant 1.000000e+00 : f32
    %322 = vector.broadcast %cst_149 : f32 to vector<1x1xf32>
    %323 = arith.addf %322, %321 : vector<1x1xf32>
    %324 = arith.divf %322, %323 : vector<1x1xf32>
    %c0_150 = arith.constant 0 : index
    %c0_151 = arith.constant 0 : index
    %c0_152 = arith.constant 0 : index
    %325 = vector.load %arg19[%c0_150, %c0_151, %c0_152] : memref<1x1x1xf32, #tpu.memory_space<vmem>>, vector<1x1x1xf32>
    %326 = vector.shape_cast %325 : vector<1x1x1xf32> to vector<1x1xf32>
    %327 = vector.shape_cast %324 : vector<1x1xf32> to vector<1x1x1xf32>
    tpu.vector_store %arg19[%c0_150, %c0_151, %c0_152], %327 {strides = array<i32>} : memref<1x1x1xf32, #tpu.memory_space<vmem>>, vector<1x1x1xf32>,
    return
  }
  func.func @transform_0(%arg0: i32) -> (i32, i32, i32) {
    %c0_i32 = arith.constant 0 : i32
    %c0_i32_0 = arith.constant 0 : i32
    %c0_i32_1 = arith.constant 0 : i32
    return %arg0, %c0_i32, %c0_i32_0 : i32, i32, i32
  }
  func.func @transform_1(%arg0: i32) -> (i32, i32, i32) {
    %c0_i32 = arith.constant 0 : i32
    %c0_i32_0 = arith.constant 0 : i32
    %c0_i32_1 = arith.constant 0 : i32
    return %arg0, %c0_i32, %c0_i32_0 : i32, i32, i32
  }
  func.func @transform_2(%arg0: i32) -> (i32, i32) {
    %c0_i32 = arith.constant 0 : i32
    %c0_i32_0 = arith.constant 0 : i32
    %c0_i32_1 = arith.constant 0 : i32
    return %c0_i32, %c0_i32_0 : i32, i32
  }
  func.func @transform_3(%arg0: i32) -> (i32, i32) {
    %c0_i32 = arith.constant 0 : i32
    %c0_i32_0 = arith.constant 0 : i32
    %c0_i32_1 = arith.constant 0 : i32
    return %c0_i32, %c0_i32_0 : i32, i32
  }
  func.func @transform_4(%arg0: i32) -> (i32, i32, i32) {
    %c0_i32 = arith.constant 0 : i32
    %c0_i32_0 = arith.constant 0 : i32
    %c0_i32_1 = arith.constant 0 : i32
    %c0_i32_2 = arith.constant 0 : i32
    return %c0_i32, %c0_i32_0, %c0_i32_1 : i32, i32, i32
  }
  func.func @transform_5(%arg0: i32) -> (i32, i32, i32) {
    %c0_i32 = arith.constant 0 : i32
    %c0_i32_0 = arith.constant 0 : i32
    %c0_i32_1 = arith.constant 0 : i32
    %c0_i32_2 = arith.constant 0 : i32
    return %c0_i32, %c0_i32_0, %c0_i32_1 : i32, i32, i32
  }
  func.func @transform_6(%arg0: i32) -> (i32, i32, i32) {
    %c0_i32 = arith.constant 0 : i32
    %c0_i32_0 = arith.constant 0 : i32
    %c0_i32_1 = arith.constant 0 : i32
    %c0_i32_2 = arith.constant 0 : i32
    return %c0_i32, %c0_i32_0, %c0_i32_1 : i32, i32, i32
  }
  func.func @transform_7(%arg0: i32) -> (i32, i32, i32) {
    %c0_i32 = arith.constant 0 : i32
    %c0_i32_0 = arith.constant 0 : i32
    %c0_i32_1 = arith.constant 0 : i32
    %c0_i32_2 = arith.constant 0 : i32
    return %c0_i32, %c0_i32_0, %c0_i32_1 : i32, i32, i32
  }
  func.func @transform_8(%arg0: i32) -> (i32, i32, i32) {
    %c0_i32 = arith.constant 0 : i32
    %c0_i32_0 = arith.constant 0 : i32
    %c0_i32_1 = arith.constant 0 : i32
    %c0_i32_2 = arith.constant 0 : i32
    return %c0_i32, %c0_i32_0, %c0_i32_1 : i32, i32, i32
  }
  func.func @transform_9(%arg0: i32) -> (i32, i32, i32) {
    %c0_i32 = arith.constant 0 : i32
    %c0_i32_0 = arith.constant 0 : i32
    %c0_i32_1 = arith.constant 0 : i32
    %c0_i32_2 = arith.constant 0 : i32
    return %c0_i32, %c0_i32_0, %c0_i32_1 : i32, i32, i32
  }
  func.func @transform_10(%arg0: i32) -> (i32, i32, i32) {
    %c0_i32 = arith.constant 0 : i32
    %c0_i32_0 = arith.constant 0 : i32
    %c0_i32_1 = arith.constant 0 : i32
    %c0_i32_2 = arith.constant 0 : i32
    return %c0_i32, %c0_i32_0, %c0_i32_1 : i32, i32, i32
  }
  func.func @transform_11(%arg0: i32) -> (i32, i32, i32) {
    %c0_i32 = arith.constant 0 : i32
    %c0_i32_0 = arith.constant 0 : i32
    %c0_i32_1 = arith.constant 0 : i32
    %c0_i32_2 = arith.constant 0 : i32
    return %c0_i32, %c0_i32_0, %c0_i32_1 : i32, i32, i32
  }
  func.func @transform_12(%arg0: i32) -> (i32, i32, i32) {
    %c0_i32 = arith.constant 0 : i32
    %c0_i32_0 = arith.constant 0 : i32
    %c0_i32_1 = arith.constant 0 : i32
    %c0_i32_2 = arith.constant 0 : i32
    return %c0_i32, %c0_i32_0, %c0_i32_1 : i32, i32, i32
  }
  func.func @transform_13(%arg0: i32) -> (i32, i32, i32) {
    %c0_i32 = arith.constant 0 : i32
    %c0_i32_0 = arith.constant 0 : i32
    %c0_i32_1 = arith.constant 0 : i32
    %c0_i32_2 = arith.constant 0 : i32
    return %c0_i32, %c0_i32_0, %c0_i32_1 : i32, i32, i32
  }
  func.func @transform_14(%arg0: i32) -> (i32, i32, i32) {
    %c0_i32 = arith.constant 0 : i32
    %c0_i32_0 = arith.constant 0 : i32
    %c0_i32_1 = arith.constant 0 : i32
    %c0_i32_2 = arith.constant 0 : i32
    return %c0_i32, %c0_i32_0, %c0_i32_1 : i32, i32, i32
  }
  func.func @transform_15(%arg0: i32) -> (i32, i32, i32) {
    %c0_i32 = arith.constant 0 : i32
    %c0_i32_0 = arith.constant 0 : i32
    %c0_i32_1 = arith.constant 0 : i32
    %c0_i32_2 = arith.constant 0 : i32
    return %c0_i32, %c0_i32_0, %c0_i32_1 : i32, i32, i32
  }
  func.func @transform_16(%arg0: i32) -> (i32, i32) {
    %c0_i32 = arith.constant 0 : i32
    %c0_i32_0 = arith.constant 0 : i32
    %c0_i32_1 = arith.constant 0 : i32
    return %c0_i32, %c0_i32_0 : i32, i32
  }
  func.func @transform_17(%arg0: i32) -> (i32, i32) {
    %c0_i32 = arith.constant 0 : i32
    %c0_i32_0 = arith.constant 0 : i32
    %c0_i32_1 = arith.constant 0 : i32
    return %c0_i32, %c0_i32_0 : i32, i32
  }
  func.func @transform_18(%arg0: i32) -> (i32, i32, i32) {
    %c0_i32 = arith.constant 0 : i32
    %c0_i32_0 = arith.constant 0 : i32
    %c0_i32_1 = arith.constant 0 : i32
    return %arg0, %c0_i32, %c0_i32_0 : i32, i32, i32
  }
}

</mosaic_0001>

<llo_original>
// kernel: prof_model_forward.1
$region0: #{prof_model_forward.1}
  #allocation0 [shape = 'u32[]', space=smem, size = 0x4, offset = 0x4, fixed_abs, tag = 'smem constant byte address 0x4 - core index']
  #allocation1 [shape = 'u32[72,128]{1,0:T(1,128)}', space=vmem, size = 0x9000, scoped, tag = 'internal scratch']
  #allocation2 [shape = 'f32[1,1]{1,0:T(1,128)S(1)}', space=vmem, size = 0x200, scoped, tag = 'scoped memory for prof_model_forward.1']
  %s0 = inlined_call_operand.vmem [shape: f32[2,8,32], index: 0, kind: input, shape index: {}]
  %s1 = inlined_call_operand.vmem [shape: f32[2,1,8], index: 1, kind: input, shape index: {}]
  %s2 = inlined_call_operand.vmem [shape: f32[1,32], index: 2, kind: input, shape index: {}]
  %s3 = inlined_call_operand.vmem [shape: f32[1,32], index: 3, kind: input, shape index: {}]
  %s4 = inlined_call_operand.vmem [shape: f32[2,32,96], index: 4, kind: input, shape index: {}]
  %s5 = inlined_call_operand.vmem [shape: f32[2,1,96], index: 5, kind: input, shape index: {}]
  %s6 = inlined_call_operand.vmem [shape: f32[2,32,32], index: 6, kind: input, shape index: {}]
  %s7 = inlined_call_operand.vmem [shape: f32[2,1,32], index: 7, kind: input, shape index: {}]
  %s8 = inlined_call_operand.vmem [shape: f32[2,1,32], index: 8, kind: input, shape index: {}]
  %s9 = inlined_call_operand.vmem [shape: f32[2,1,32], index: 9, kind: input, shape index: {}]
  %s10 = inlined_call_operand.vmem [shape: f32[2,32,64], index: 10, kind: input, shape index: {}]
  %s11 = inlined_call_operand.vmem [shape: f32[2,1,64], index: 11, kind: input, shape index: {}]
  %s12 = inlined_call_operand.vmem [shape: f32[2,64,32], index: 12, kind: input, shape index: {}]
  %s13 = inlined_call_operand.vmem [shape: f32[2,1,32], index: 13, kind: input, shape index: {}]
  %s14 = inlined_call_operand.vmem [shape: f32[2,1,32], index: 14, kind: input, shape index: {}]
  %s15 = inlined_call_operand.vmem [shape: f32[2,1,32], index: 15, kind: input, shape index: {}]
  %s16 = inlined_call_operand.vmem [shape: f32[32,1], index: 16, kind: input, shape index: {}]
  %s17 = inlined_call_operand.<no memory space> [shape: f32[1,1], index: 17, kind: input, shape index: {}]
  %s18 = inlined_call_operand.vmem [shape: f32[2,1,1], index: 18, kind: output, shape index: {}]
  %s19 = sld [smem:[#allocation0]]
  $region105: #{prof_model_forward.1} parent=0
    _
  %s21 = ssub.s32 1, %s19
  %s22 = scalar_select 0, %s21, %s19
  %v23 = vstv %s17
  %24 = vst [vmem:[#allocation2] sm:$0x1] %v23
  loop: start=0, step=1, limit=4
  $region2: #{prof_model_forward.1} parent=0 // loop_pre_header
    _
  $region3: #{prof_model_forward.1} parent=0 // loop_header
    %s26 = sphi 0, %s30
    %p27 = scmp.ge.s32.totalorder %s26, 4
    %s36 = sphi 0, %s38
    %s39 = sphi 0, %s36
    %s40 = sphi 0, %s39
    %s56 = sphi 0, %s40
    %s62 = sphi 0, %s64
    %s65 = sphi 0, %s62
    %s66 = sphi 0, %s65
    %s82 = sphi 0, %s66
    %s86 = sphi 0, %s86
    %s88 = sphi 0, %s86
    %s89 = sphi 0, %s88
    %s103 = sphi 0, %s89
    %s107 = sphi 0, %s107
    %s109 = sphi 0, %s107
    %s110 = sphi 0, %s109
    %s124 = sphi 0, %s110
    %s128 = sphi 0, %s128
    %s130 = sphi 0, %s128
    %s131 = sphi 0, %s130
    %s145 = sphi 0, %s131
    %s149 = sphi 0, %s149
    %s151 = sphi 0, %s149
    %s152 = sphi 0, %s151
    %s166 = sphi 0, %s152
    %s170 = sphi 0, %s170
    %s172 = sphi 0, %s170
    %s173 = sphi 0, %s172
    %s187 = sphi 0, %s173
    %s191 = sphi 0, %s191
    %s193 = sphi 0, %s191
    %s194 = sphi 0, %s193
    %s208 = sphi 0, %s194
    %s212 = sphi 0, %s212
    %s214 = sphi 0, %s212
    %s215 = sphi 0, %s214
    %s229 = sphi 0, %s215
    %s233 = sphi 0, %s233
    %s235 = sphi 0, %s233
    %s236 = sphi 0, %s235
    %s250 = sphi 0, %s236
    %s254 = sphi 0, %s254
    %s256 = sphi 0, %s254
    %s257 = sphi 0, %s256
    %s271 = sphi 0, %s257
    %s275 = sphi 0, %s275
    %s277 = sphi 0, %s275
    %s278 = sphi 0, %s277
    %s292 = sphi 0, %s278
    %s296 = sphi 0, %s296
    %s298 = sphi 0, %s296
    %s299 = sphi 0, %s298
    %s313 = sphi 0, %s299
    %s317 = sphi 0, %s317
    %s319 = sphi 0, %s317
    %s320 = sphi 0, %s319
    %s334 = sphi 0, %s320
    %s338 = sphi 0, %s338
    %s340 = sphi 0, %s338
    %s341 = sphi 0, %s340
    %s355 = sphi 0, %s341
    %s359 = sphi 0, %s359
    %s361 = sphi 0, %s359
    %s362 = sphi 0, %s361
    %s376 = sphi 0, %s362
    %s380 = sphi 0, %s380
    %s382 = sphi 0, %s380
    %s383 = sphi 0, %s382
    %s397 = sphi 0, %s383
    %s401 = sphi 0, %s401
    %s403 = sphi 0, %s401
    %s404 = sphi 0, %s403
    %s418 = sphi 0, %s404
    %s424 = sphi 0, %s426
    %s427 = sphi 0, %s424
    %s428 = sphi 0, %s427
    %s444 = sphi 0, %s428
  $region4: #{prof_model_forward.1} parent=0 // loop_header_branch
    %29 = sbr.rel (%p27) target = $region8
  $region5: #{prof_model_forward.1} parent=0 // loop_body
    %s31 = ssub.s32 %s26, 1
    %s32 = ssub.s32 %s26, 2
    %s33 = sadd.s32 %s26, 1
    %s34 = ssub.s32 %s26, %s33
    %p35 = scmp.eq.s32.totalorder %s34, 0
    %s37 = sadd.s32 %s36, 1
    %s38 = scalar_select %p35, %s36, %s37
    %p41 = pneg %p35
    %p42 = scmp.eq.s32.totalorder %s26, 1
    %p43 = por %p41, %p42
    %p44 = scmp.ne.s32.totalorder %s36, %s39
    %p45 = scmp.eq.s32.totalorder %s26, 0
    %p46 = por %p44, %p45
    %p47 = scmp.ne.s32.totalorder %s36, %s39
    %p48 = scmp.eq.s32.totalorder %s31, 1
    %p49 = por %p47, %p48
    %p50 = scmp.ne.s32.totalorder %s39, %s40
    %p51 = scmp.eq.s32.totalorder %s31, 0
    %p52 = por %p50, %p51
    %p53 = scmp.ne.s32.totalorder %s39, %s40
    %p54 = scmp.eq.s32.totalorder %s32, 1
    %p55 = por %p53, %p54
    %p57 = scmp.ne.s32.totalorder %s40, %s56
    %p58 = scmp.eq.s32.totalorder %s32, 0
    %p59 = por %p57, %p58
    %s60 = ssub.s32 %s26, %s33
    %p61 = scmp.eq.s32.totalorder %s60, 0
    %s63 = sadd.s32 %s62, 1
    %s64 = scalar_select %p61, %s62, %s63
    %p67 = pneg %p61
    %p68 = scmp.eq.s32.totalorder %s26, 1
    %p69 = por %p67, %p68
    %p70 = scmp.ne.s32.totalorder %s62, %s65
    %p71 = scmp.eq.s32.totalorder %s26, 0
    %p72 = por %p70, %p71
    %p73 = scmp.ne.s32.totalorder %s62, %s65
    %p74 = scmp.eq.s32.totalorder %s31, 1
    %p75 = por %p73, %p74
    %p76 = scmp.ne.s32.totalorder %s65, %s66
    %p77 = scmp.eq.s32.totalorder %s31, 0
    %p78 = por %p76, %p77
    %p79 = scmp.ne.s32.totalorder %s65, %s66
    %p80 = scmp.eq.s32.totalorder %s32, 1
    %p81 = por %p79, %p80
    %p83 = scmp.ne.s32.totalorder %s66, %s82
    %p84 = scmp.eq.s32.totalorder %s32, 0
    %p85 = por %p83, %p84
    %s87 = sadd.s32 %s86, 1
    %p90 = scmp.eq.s32.totalorder %s26, 1
    %p91 = scmp.ne.s32.totalorder %s86, %s88
    %p92 = scmp.eq.s32.totalorder %s26, 0
    %p93 = por %p91, %p92
    %p94 = scmp.ne.s32.totalorder %s86, %s88
    %p95 = scmp.eq.s32.totalorder %s31, 1
    %p96 = por %p94, %p95
    %p97 = scmp.ne.s32.totalorder %s88, %s89
    %p98 = scmp.eq.s32.totalorder %s31, 0
    %p99 = por %p97, %p98
    %p100 = scmp.ne.s32.totalorder %s88, %s89
    %p101 = scmp.eq.s32.totalorder %s32, 1
    %p102 = por %p100, %p101
    %p104 = scmp.ne.s32.totalorder %s89, %s103
    %p105 = scmp.eq.s32.totalorder %s32, 0
    %p106 = por %p104, %p105
    %s108 = sadd.s32 %s107, 1
    %p111 = scmp.eq.s32.totalorder %s26, 1
    %p112 = scmp.ne.s32.totalorder %s107, %s109
    %p113 = scmp.eq.s32.totalorder %s26, 0
    %p114 = por %p112, %p113
    %p115 = scmp.ne.s32.totalorder %s107, %s109
    %p116 = scmp.eq.s32.totalorder %s31, 1
    %p117 = por %p115, %p116
    %p118 = scmp.ne.s32.totalorder %s109, %s110
    %p119 = scmp.eq.s32.totalorder %s31, 0
    %p120 = por %p118, %p119
    %p121 = scmp.ne.s32.totalorder %s109, %s110
    %p122 = scmp.eq.s32.totalorder %s32, 1
    %p123 = por %p121, %p122
    %p125 = scmp.ne.s32.totalorder %s110, %s124
    %p126 = scmp.eq.s32.totalorder %s32, 0
    %p127 = por %p125, %p126
    %s129 = sadd.s32 %s128, 1
    %p132 = scmp.eq.s32.totalorder %s26, 1
    %p133 = scmp.ne.s32.totalorder %s128, %s130
    %p134 = scmp.eq.s32.totalorder %s26, 0
    %p135 = por %p133, %p134
    %p136 = scmp.ne.s32.totalorder %s128, %s130
    %p137 = scmp.eq.s32.totalorder %s31, 1
    %p138 = por %p136, %p137
    %p139 = scmp.ne.s32.totalorder %s130, %s131
    %p140 = scmp.eq.s32.totalorder %s31, 0
    %p141 = por %p139, %p140
    %p142 = scmp.ne.s32.totalorder %s130, %s131
    %p143 = scmp.eq.s32.totalorder %s32, 1
    %p144 = por %p142, %p143
    %p146 = scmp.ne.s32.totalorder %s131, %s145
    %p147 = scmp.eq.s32.totalorder %s32, 0
    %p148 = por %p146, %p147
    %s150 = sadd.s32 %s149, 1
    %p153 = scmp.eq.s32.totalorder %s26, 1
    %p154 = scmp.ne.s32.totalorder %s149, %s151
    %p155 = scmp.eq.s32.totalorder %s26, 0
    %p156 = por %p154, %p155
    %p157 = scmp.ne.s32.totalorder %s149, %s151
    %p158 = scmp.eq.s32.totalorder %s31, 1
    %p159 = por %p157, %p158
    %p160 = scmp.ne.s32.totalorder %s151, %s152
    %p161 = scmp.eq.s32.totalorder %s31, 0
    %p162 = por %p160, %p161
    %p163 = scmp.ne.s32.totalorder %s151, %s152
    %p164 = scmp.eq.s32.totalorder %s32, 1
    %p165 = por %p163, %p164
    %p167 = scmp.ne.s32.totalorder %s152, %s166
    %p168 = scmp.eq.s32.totalorder %s32, 0
    %p169 = por %p167, %p168
    %s171 = sadd.s32 %s170, 1
    %p174 = scmp.eq.s32.totalorder %s26, 1
    %p175 = scmp.ne.s32.totalorder %s170, %s172
    %p176 = scmp.eq.s32.totalorder %s26, 0
    %p177 = por %p175, %p176
    %p178 = scmp.ne.s32.totalorder %s170, %s172
    %p179 = scmp.eq.s32.totalorder %s31, 1
    %p180 = por %p178, %p179
    %p181 = scmp.ne.s32.totalorder %s172, %s173
    %p182 = scmp.eq.s32.totalorder %s31, 0
    %p183 = por %p181, %p182
    %p184 = scmp.ne.s32.totalorder %s172, %s173
    %p185 = scmp.eq.s32.totalorder %s32, 1
    %p186 = por %p184, %p185
    %p188 = scmp.ne.s32.totalorder %s173, %s187
    %p189 = scmp.eq.s32.totalorder %s32, 0
    %p190 = por %p188, %p189
    %s192 = sadd.s32 %s191, 1
    %p195 = scmp.eq.s32.totalorder %s26, 1
    %p196 = scmp.ne.s32.totalorder %s191, %s193
    %p197 = scmp.eq.s32.totalorder %s26, 0
    %p198 = por %p196, %p197
    %p199 = scmp.ne.s32.totalorder %s191, %s193
    %p200 = scmp.eq.s32.totalorder %s31, 1
    %p201 = por %p199, %p200
    %p202 = scmp.ne.s32.totalorder %s193, %s194
    %p203 = scmp.eq.s32.totalorder %s31, 0
    %p204 = por %p202, %p203
    %p205 = scmp.ne.s32.totalorder %s193, %s194
    %p206 = scmp.eq.s32.totalorder %s32, 1
    %p207 = por %p205, %p206
    %p209 = scmp.ne.s32.totalorder %s194, %s208
    %p210 = scmp.eq.s32.totalorder %s32, 0
    %p211 = por %p209, %p210
    %s213 = sadd.s32 %s212, 1
    %p216 = scmp.eq.s32.totalorder %s26, 1
    %p217 = scmp.ne.s32.totalorder %s212, %s214
    %p218 = scmp.eq.s32.totalorder %s26, 0
    %p219 = por %p217, %p218
    %p220 = scmp.ne.s32.totalorder %s212, %s214
    %p221 = scmp.eq.s32.totalorder %s31, 1
    %p222 = por %p220, %p221
    %p223 = scmp.ne.s32.totalorder %s214, %s215
    %p224 = scmp.eq.s32.totalorder %s31, 0
    %p225 = por %p223, %p224
    %p226 = scmp.ne.s32.totalorder %s214, %s215
    %p227 = scmp.eq.s32.totalorder %s32, 1
    %p228 = por %p226, %p227
    %p230 = scmp.ne.s32.totalorder %s215, %s229
    %p231 = scmp.eq.s32.totalorder %s32, 0
    %p232 = por %p230, %p231
    %s234 = sadd.s32 %s233, 1
    %p237 = scmp.eq.s32.totalorder %s26, 1
    %p238 = scmp.ne.s32.totalorder %s233, %s235
    %p239 = scmp.eq.s32.totalorder %s26, 0
    %p240 = por %p238, %p239
    %p241 = scmp.ne.s32.totalorder %s233, %s235
    %p242 = scmp.eq.s32.totalorder %s31, 1
    %p243 = por %p241, %p242
    %p244 = scmp.ne.s32.totalorder %s235, %s236
    %p245 = scmp.eq.s32.totalorder %s31, 0
    %p246 = por %p244, %p245
    %p247 = scmp.ne.s32.totalorder %s235, %s236
    %p248 = scmp.eq.s32.totalorder %s32, 1
    %p249 = por %p247, %p248
    %p251 = scmp.ne.s32.totalorder %s236, %s250
    %p252 = scmp.eq.s32.totalorder %s32, 0
    %p253 = por %p251, %p252
    %s255 = sadd.s32 %s254, 1
    %p258 = scmp.eq.s32.totalorder %s26, 1
    %p259 = scmp.ne.s32.totalorder %s254, %s256
    %p260 = scmp.eq.s32.totalorder %s26, 0
    %p261 = por %p259, %p260
    %p262 = scmp.ne.s32.totalorder %s254, %s256
    %p263 = scmp.eq.s32.totalorder %s31, 1
    %p264 = por %p262, %p263
    %p265 = scmp.ne.s32.totalorder %s256, %s257
    %p266 = scmp.eq.s32.totalorder %s31, 0
    %p267 = por %p265, %p266
    %p268 = scmp.ne.s32.totalorder %s256, %s257
    %p269 = scmp.eq.s32.totalorder %s32, 1
    %p270 = por %p268, %p269
    %p272 = scmp.ne.s32.totalorder %s257, %s271
    %p273 = scmp.eq.s32.totalorder %s32, 0
    %p274 = por %p272, %p273
    %s276 = sadd.s32 %s275, 1
    %p279 = scmp.eq.s32.totalorder %s26, 1
    %p280 = scmp.ne.s32.totalorder %s275, %s277
    %p281 = scmp.eq.s32.totalorder %s26, 0
    %p282 = por %p280, %p281
    %p283 = scmp.ne.s32.totalorder %s275, %s277
    %p284 = scmp.eq.s32.totalorder %s31, 1
    %p285 = por %p283, %p284
    %p286 = scmp.ne.s32.totalorder %s277, %s278
    %p287 = scmp.eq.s32.totalorder %s31, 0
    %p288 = por %p286, %p287
    %p289 = scmp.ne.s32.totalorder %s277, %s278
    %p290 = scmp.eq.s32.totalorder %s32, 1
    %p291 = por %p289, %p290
    %p293 = scmp.ne.s32.totalorder %s278, %s292
    %p294 = scmp.eq.s32.totalorder %s32, 0
    %p295 = por %p293, %p294
    %s297 = sadd.s32 %s296, 1
    %p300 = scmp.eq.s32.totalorder %s26, 1
    %p301 = scmp.ne.s32.totalorder %s296, %s298
    %p302 = scmp.eq.s32.totalorder %s26, 0
    %p303 = por %p301, %p302
    %p304 = scmp.ne.s32.totalorder %s296, %s298
    %p305 = scmp.eq.s32.totalorder %s31, 1
    %p306 = por %p304, %p305
    %p307 = scmp.ne.s32.totalorder %s298, %s299
    %p308 = scmp.eq.s32.totalorder %s31, 0
    %p309 = por %p307, %p308
    %p310 = scmp.ne.s32.totalorder %s298, %s299
    %p311 = scmp.eq.s32.totalorder %s32, 1
    %p312 = por %p310, %p311
    %p314 = scmp.ne.s32.totalorder %s299, %s313
    %p315 = scmp.eq.s32.totalorder %s32, 0
    %p316 = por %p314, %p315
    %s318 = sadd.s32 %s317, 1
    %p321 = scmp.eq.s32.totalorder %s26, 1
    %p322 = scmp.ne.s32.totalorder %s317, %s319
    %p323 = scmp.eq.s32.totalorder %s26, 0
    %p324 = por %p322, %p323
    %p325 = scmp.ne.s32.totalorder %s317, %s319
    %p326 = scmp.eq.s32.totalorder %s31, 1
    %p327 = por %p325, %p326
    %p328 = scmp.ne.s32.totalorder %s319, %s320
    %p329 = scmp.eq.s32.totalorder %s31, 0
    %p330 = por %p328, %p329
    %p331 = scmp.ne.s32.totalorder %s319, %s320
    %p332 = scmp.eq.s32.totalorder %s32, 1
    %p333 = por %p331, %p332
    %p335 = scmp.ne.s32.totalorder %s320, %s334
    %p336 = scmp.eq.s32.totalorder %s32, 0
    %p337 = por %p335, %p336
    %s339 = sadd.s32 %s338, 1
    %p342 = scmp.eq.s32.totalorder %s26, 1
    %p343 = scmp.ne.s32.totalorder %s338, %s340
    %p344 = scmp.eq.s32.totalorder %s26, 0
    %p345 = por %p343, %p344
    %p346 = scmp.ne.s32.totalorder %s338, %s340
    %p347 = scmp.eq.s32.totalorder %s31, 1
    %p348 = por %p346, %p347
    %p349 = scmp.ne.s32.totalorder %s340, %s341
    %p350 = scmp.eq.s32.totalorder %s31, 0
    %p351 = por %p349, %p350
    %p352 = scmp.ne.s32.totalorder %s340, %s341
    %p353 = scmp.eq.s32.totalorder %s32, 1
    %p354 = por %p352, %p353
    %p356 = scmp.ne.s32.totalorder %s341, %s355
    %p357 = scmp.eq.s32.totalorder %s32, 0
    %p358 = por %p356, %p357
    %s360 = sadd.s32 %s359, 1
    %p363 = scmp.eq.s32.totalorder %s26, 1
    %p364 = scmp.ne.s32.totalorder %s359, %s361
    %p365 = scmp.eq.s32.totalorder %s26, 0
    %p366 = por %p364, %p365
    %p367 = scmp.ne.s32.totalorder %s359, %s361
    %p368 = scmp.eq.s32.totalorder %s31, 1
    %p369 = por %p367, %p368
    %p370 = scmp.ne.s32.totalorder %s361, %s362
    %p371 = scmp.eq.s32.totalorder %s31, 0
    %p372 = por %p370, %p371
    %p373 = scmp.ne.s32.totalorder %s361, %s362
    %p374 = scmp.eq.s32.totalorder %s32, 1
    %p375 = por %p373, %p374
    %p377 = scmp.ne.s32.totalorder %s362, %s376
    %p378 = scmp.eq.s32.totalorder %s32, 0
    %p379 = por %p377, %p378
    %s381 = sadd.s32 %s380, 1
    %p384 = scmp.eq.s32.totalorder %s26, 1
    %p385 = scmp.ne.s32.totalorder %s380, %s382
    %p386 = scmp.eq.s32.totalorder %s26, 0
    %p387 = por %p385, %p386
    %p388 = scmp.ne.s32.totalorder %s380, %s382
    %p389 = scmp.eq.s32.totalorder %s31, 1
    %p390 = por %p388, %p389
    %p391 = scmp.ne.s32.totalorder %s382, %s383
    %p392 = scmp.eq.s32.totalorder %s31, 0
    %p393 = por %p391, %p392
    %p394 = scmp.ne.s32.totalorder %s382, %s383
    %p395 = scmp.eq.s32.totalorder %s32, 1
    %p396 = por %p394, %p395
    %p398 = scmp.ne.s32.totalorder %s383, %s397
    %p399 = scmp.eq.s32.totalorder %s32, 0
    %p400 = por %p398, %p399
    %s402 = sadd.s32 %s401, 1
    %p405 = scmp.eq.s32.totalorder %s26, 1
    %p406 = scmp.ne.s32.totalorder %s401, %s403
    %p407 = scmp.eq.s32.totalorder %s26, 0
    %p408 = por %p406, %p407
    %p409 = scmp.ne.s32.totalorder %s401, %s403
    %p410 = scmp.eq.s32.totalorder %s31, 1
    %p411 = por %p409, %p410
    %p412 = scmp.ne.s32.totalorder %s403, %s404
    %p413 = scmp.eq.s32.totalorder %s31, 0
    %p414 = por %p412, %p413
    %p415 = scmp.ne.s32.totalorder %s403, %s404
    %p416 = scmp.eq.s32.totalorder %s32, 1
    %p417 = por %p415, %p416
    %p419 = scmp.ne.s32.totalorder %s404, %s418
    %p420 = scmp.eq.s32.totalorder %s32, 0
    %p421 = por %p419, %p420
    %s422 = ssub.s32 %s26, %s33
    %p423 = scmp.eq.s32.totalorder %s422, 0
    %s425 = sadd.s32 %s424, 1
    %s426 = scalar_select %p423, %s424, %s425
    %p429 = pneg %p423
    %p430 = scmp.eq.s32.totalorder %s26, 1
    %p431 = por %p429, %p430
    %p432 = scmp.ne.s32.totalorder %s424, %s427
    %p433 = scmp.eq.s32.totalorder %s26, 0
    %p434 = por %p432, %p433
    %p435 = scmp.ne.s32.totalorder %s424, %s427
    %p436 = scmp.eq.s32.totalorder %s31, 1
    %p437 = por %p435, %p436
    %p438 = scmp.ne.s32.totalorder %s427, %s428
    %p439 = scmp.eq.s32.totalorder %s31, 0
    %p440 = por %p438, %p439
    %p441 = scmp.ne.s32.totalorder %s427, %s428
    %p442 = scmp.eq.s32.totalorder %s32, 1
    %p443 = por %p441, %p442
    %p445 = scmp.ne.s32.totalorder %s428, %s444
    %p446 = scmp.eq.s32.totalorder %s32, 0
    %p447 = por %p445, %p446
    %p448 = scmp.le.s32.totalorder 1, %s26
    %p449 = scmp.lt.s32.totalorder %s26, 3
    %p450 = pnand %p448, %p449
    %p451 = pneg %p450
    // Predicated region
    $region9: #{prof_model_forward.1} parent=5 // pred_check
      _
    $region10: #{prof_model_forward.1} parent=5 // pred_check_branch
      %453 = sbr.rel (%p450) target = $region12
    $region11: #{prof_model_forward.1} parent=5 // pred_region
      %s454 = ssub.s32 %s26, 1
      // Predicated region
      $region13: #{prof_model_forward.1} parent=11 // pred_check
        %p455 = pneg %p99
      $region14: #{prof_model_forward.1} parent=11 // pred_check_branch
        %457 = sbr.rel (%p455) target = $region16
      $region15: #{prof_model_forward.1} parent=11 // pred_region
        _
      $region16: #{prof_model_forward.1} parent=11 // pred_fallthru
        _
      // Predicated region
      $region17: #{prof_model_forward.1} parent=11 // pred_check
        %p458 = pneg %p120
      $region18: #{prof_model_forward.1} parent=11 // pred_check_branch
        %460 = sbr.rel (%p458) target = $region20
      $region19: #{prof_model_forward.1} parent=11 // pred_region
        _
      $region20: #{prof_model_forward.1} parent=11 // pred_fallthru
        _
      // Predicated region
      $region21: #{prof_model_forward.1} parent=11 // pred_check
        %p461 = pneg %p141
      $region22: #{prof_model_forward.1} parent=11 // pred_check_branch
        %463 = sbr.rel (%p461) target = $region24
      $region23: #{prof_model_forward.1} parent=11 // pred_region
        _
      $region24: #{prof_model_forward.1} parent=11 // pred_fallthru
        _
      // Predicated region
      $region25: #{prof_model_forward.1} parent=11 // pred_check
        %p464 = pneg %p162
      $region26: #{prof_model_forward.1} parent=11 // pred_check_branch
        %466 = sbr.rel (%p464) target = $region28
      $region27: #{prof_model_forward.1} parent=11 // pred_region
        _
      $region28: #{prof_model_forward.1} parent=11 // pred_fallthru
        _
      // Predicated region
      $region29: #{prof_model_forward.1} parent=11 // pred_check
        %p467 = pneg %p183
      $region30: #{prof_model_forward.1} parent=11 // pred_check_branch
        %469 = sbr.rel (%p467) target = $region32
      $region31: #{prof_model_forward.1} parent=11 // pred_region
        _
      $region32: #{prof_model_forward.1} parent=11 // pred_fallthru
        _
      // Predicated region
      $region33: #{prof_model_forward.1} parent=11 // pred_check
        %p470 = pneg %p204
      $region34: #{prof_model_forward.1} parent=11 // pred_check_branch
        %472 = sbr.rel (%p470) target = $region36
      $region35: #{prof_model_forward.1} parent=11 // pred_region
        _
      $region36: #{prof_model_forward.1} parent=11 // pred_fallthru
        _
      // Predicated region
      $region37: #{prof_model_forward.1} parent=11 // pred_check
        %p473 = pneg %p225
      $region38: #{prof_model_forward.1} parent=11 // pred_check_branch
        %475 = sbr.rel (%p473) target = $region40
      $region39: #{prof_model_forward.1} parent=11 // pred_region
        _
      $region40: #{prof_model_forward.1} parent=11 // pred_fallthru
        _
      // Predicated region
      $region41: #{prof_model_forward.1} parent=11 // pred_check
        %p476 = pneg %p246
      $region42: #{prof_model_forward.1} parent=11 // pred_check_branch
        %478 = sbr.rel (%p476) target = $region44
      $region43: #{prof_model_forward.1} parent=11 // pred_region
        _
      $region44: #{prof_model_forward.1} parent=11 // pred_fallthru
        _
      // Predicated region
      $region45: #{prof_model_forward.1} parent=11 // pred_check
        %p479 = pneg %p267
      $region46: #{prof_model_forward.1} parent=11 // pred_check_branch
        %481 = sbr.rel (%p479) target = $region48
      $region47: #{prof_model_forward.1} parent=11 // pred_region
        _
      $region48: #{prof_model_forward.1} parent=11 // pred_fallthru
        _
      // Predicated region
      $region49: #{prof_model_forward.1} parent=11 // pred_check
        %p482 = pneg %p288
      $region50: #{prof_model_forward.1} parent=11 // pred_check_branch
        %484 = sbr.rel (%p482) target = $region52
      $region51: #{prof_model_forward.1} parent=11 // pred_region
        _
      $region52: #{prof_model_forward.1} parent=11 // pred_fallthru
        _
      // Predicated region
      $region53: #{prof_model_forward.1} parent=11 // pred_check
        %p485 = pneg %p309
      $region54: #{prof_model_forward.1} parent=11 // pred_check_branch
        %487 = sbr.rel (%p485) target = $region56
      $region55: #{prof_model_forward.1} parent=11 // pred_region
        _
      $region56: #{prof_model_forward.1} parent=11 // pred_fallthru
        _
      // Predicated region
      $region57: #{prof_model_forward.1} parent=11 // pred_check
        %p488 = pneg %p330
      $region58: #{prof_model_forward.1} parent=11 // pred_check_branch
        %490 = sbr.rel (%p488) target = $region60
      $region59: #{prof_model_forward.1} parent=11 // pred_region
        _
      $region60: #{prof_model_forward.1} parent=11 // pred_fallthru
        _
      // Predicated region
      $region61: #{prof_model_forward.1} parent=11 // pred_check
        %p491 = pneg %p351
      $region62: #{prof_model_forward.1} parent=11 // pred_check_branch
        %493 = sbr.rel (%p491) target = $region64
      $region63: #{prof_model_forward.1} parent=11 // pred_region
        _
      $region64: #{prof_model_forward.1} parent=11 // pred_fallthru
        _
      // Predicated region
      $region65: #{prof_model_forward.1} parent=11 // pred_check
        %p494 = pneg %p372
      $region66: #{prof_model_forward.1} parent=11 // pred_check_branch
        %496 = sbr.rel (%p494) target = $region68
      $region67: #{prof_model_forward.1} parent=11 // pred_region
        _
      $region68: #{prof_model_forward.1} parent=11 // pred_fallthru
        _
      // Predicated region
      $region69: #{prof_model_forward.1} parent=11 // pred_check
        %p497 = pneg %p393
      $region70: #{prof_model_forward.1} parent=11 // pred_check_branch
        %499 = sbr.rel (%p497) target = $region72
      $region71: #{prof_model_forward.1} parent=11 // pred_region
        _
      $region72: #{prof_model_forward.1} parent=11 // pred_fallthru
        _
      // Predicated region
      $region73: #{prof_model_forward.1} parent=11 // pred_check
        %p500 = pneg %p414
      $region74: #{prof_model_forward.1} parent=11 // pred_check_branch
        %502 = sbr.rel (%p500) target = $region76
      $region75: #{prof_model_forward.1} parent=11 // pred_region
        _
      $region76: #{prof_model_forward.1} parent=11 // pred_fallthru
        _
    $region12: #{prof_model_forward.1} parent=5 // pred_fallthru
      _
    %p503 = scmp.lt.s32.totalorder %s26, 2
    // Predicated region
    $region77: #{prof_model_forward.1} parent=5 // pred_check
      %p504 = pneg %p503
    $region78: #{prof_model_forward.1} parent=5 // pred_check_branch
      %506 = sbr.rel (%p504) target = $region80
    $region79: #{prof_model_forward.1} parent=5 // pred_region
      // Predicated region
      $region81: #{prof_model_forward.1} parent=79 // pred_check
        %p507 = pneg %p46
      $region82: #{prof_model_forward.1} parent=79 // pred_check_branch
        %509 = sbr.rel (%p507) target = $region84
      $region83: #{prof_model_forward.1} parent=79 // pred_region
        %p510 = scmp.lt.s32.totalorder %s26, 1
        %s511 = scalar_select %p510, %s26, 1
        %s512 = smul.addr %s511, 8
        %s513 = scalar_lea.vmem %s0, %s512
      $region84: #{prof_model_forward.1} parent=79 // pred_fallthru
        _
      // Predicated region
      $region85: #{prof_model_forward.1} parent=79 // pred_check
        %p514 = pneg %p72
      $region86: #{prof_model_forward.1} parent=79 // pred_check_branch
        %516 = sbr.rel (%p514) target = $region88
      $region87: #{prof_model_forward.1} parent=79 // pred_region
        %p517 = scmp.lt.s32.totalorder %s26, 1
        %s518 = scalar_select %p517, %s26, 1
        %s519 = scalar_lea.vmem %s1, %s518
      $region88: #{prof_model_forward.1} parent=79 // pred_fallthru
        _
    $region80: #{prof_model_forward.1} parent=5 // pred_fallthru
      _
    %p520 = scmp.le.s32.totalorder 1, %s26
    %p521 = scmp.lt.s32.totalorder %s26, 3
    %p522 = pnand %p520, %p521
    %p523 = pneg %p522
    // Predicated region
    $region89: #{prof_model_forward.1} parent=5 // pred_check
      _
    $region90: #{prof_model_forward.1} parent=5 // pred_check_branch
      %525 = sbr.rel (%p522) target = $region92
    $region91: #{prof_model_forward.1} parent=5 // pred_region
      %s526 = ssub.s32 %s26, 1
      %p527 = scmp.lt.s32.totalorder %s31, 1
      %s528 = scalar_select %p527, %s31, 1
      %s529 = smul.addr %s528, 8
      %s530 = scalar_lea.vmem %s0, %s529
      %p531 = pneg %p52
      %p532 = pneg %p49
      %p533 = scmp.lt.s32.totalorder %s31, 1
      %s534 = scalar_select %p533, %s31, 1
      %s535 = scalar_lea.vmem %s1, %s534
      %p536 = pneg %p78
      %p537 = pneg %p75
      %p538 = pneg %p99
      %p539 = pneg %p96
      %p540 = pneg %p120
      %p541 = pneg %p117
      %p542 = pneg %p141
      %p543 = pneg %p138
      %p544 = pneg %p162
      %p545 = pneg %p159
      %p546 = pneg %p183
      %p547 = pneg %p180
      %p548 = pneg %p204
      %p549 = pneg %p201
      %p550 = pneg %p225
      %p551 = pneg %p222
      %p552 = pneg %p246
      %p553 = pneg %p243
      %p554 = pneg %p267
      %p555 = pneg %p264
      %p556 = pneg %p288
      %p557 = pneg %p285
      %p558 = pneg %p309
      %p559 = pneg %p306
      %p560 = pneg %p330
      %p561 = pneg %p327
      %p562 = pneg %p351
      %p563 = pneg %p348
      %p564 = pneg %p372
      %p565 = pneg %p369
      %p566 = pneg %p393
      %p567 = pneg %p390
      %p568 = pneg %p414
      %p569 = pneg %p411
      %p570 = pneg %p440
      %p571 = pneg %p437
      %p572 = scmp.lt.s32.totalorder %s31, 1
      %s573 = scalar_select %p572, %s31, 1
      %s574 = scalar_lea.vmem %s18, %s573
      %p575 = scmp.lt.s32.totalorder %s31, 1
      %s576 = scalar_select %p575, %s31, 1
      %s577 = smul.addr %s576, 8
      %s578 = scalar_lea.vmem %s0, %s577
      %p579 = scmp.lt.s32.totalorder %s31, 1
      %s580 = scalar_select %p579, %s31, 1
      %s581 = scalar_lea.vmem %s1, %s580
      %p582 = scmp.lt.s32.totalorder %s31, 1
      %s583 = scalar_select %p582, %s31, 1
      %s584 = scalar_lea.vmem %s18, %s583
      %v585 = vld [vmem:[%s578] sm:$0xff]
      %v586 = vld [vmem:[%s581] sm:$0x1]
      %v587 = vld [vmem:[%s2] sm:$0x1]
      %v588 = vld [vmem:[%s3] sm:$0x1]
      %vm589 = vcmask 261120
      %v590 = vsel %vm589, %v585, 0.0
      %591 = vadd.xlane.f32.xlu0 %v590
      %v592 = vpop.xlane.xlu0 %591
      %v593 = vrcp.pop 32.0
      %v594 = vmul.f32 32.0, %v593
      %v595 = vsub.f32 1.0, %v594
      %v596 = vmul.f32 %v593, %v595
      %v597 = vadd.f32 %v593, %v596
      %vm598 = vweird.f32 %v593
      %v599 = vsel %vm598, %v593, %v597
      %v600 = vmul.f32 %v592, %v599
      %v601 = vsub.f32 %v585, %v600
      %v602 = vmul.f32 %v601, %v601
      %v603 = vsel %vm589, %v602, 0.0
      %604 = vadd.xlane.f32.xlu0 %v603
      %v605 = vpop.xlane.xlu0 %604
      %v606 = vmul.f32 %v605, %v599
      %v607 = vadd.f32 %v606, 1e-12
      %v608 = vrsqrt.pop %v607
      %v609 = vmul.f32 %v608, %v607
      %v610 = vmul.f32 %v609, %v608
      %v611 = vmul.f32 0.5, %v610
      %v612 = vsub.f32 1.5, %v611
      %v613 = vmul.f32 %v608, %v612
      %vm614 = vweird.f32 %v607
      %vm615 = vweird.f32 %v608
      %vm616 = vmor %vm614, %vm615
      %v617 = vsel %vm616, %v608, %v613
      %v618 = vmul.f32 %v601, %v617
      %v620 = vperm.slane %v587, 0
      %v622 = vmul.f32 %v618, %v620
      %v624 = vperm.slane %v588, 0
      %v626 = vadd.f32 %v622, %v624
      %v627 = vld [vmem:[%s4] sm:$0xff]
      %v628 = vld [vmem:[%s4 + $0x8] sm:$0xff]
      %v629 = vld [vmem:[%s4 + $0x10] sm:$0xff]
      %v630 = vld [vmem:[%s4 + $0x18] sm:$0xff]
      %v631 = vld [vmem:[%s5] sm:$0x1]
      %v633 = vperm.slane %v631, 0
      %v636 = vsel %vm589, %v626, 0
      %638 = vmatpush.msra.mxu0 0.0
      %639 = vmatpush.msra.mxu0 0.0
      %640 = vmatpush.msra.mxu0 0.0
      %641 = vmatpush.msra.mxu0 0.0
      %642 = vmatpush.msra.mxu0 0.0
      %643 = vmatpush.msra.mxu0 0.0
      %644 = vmatpush.msra.mxu0 0.0
      %645 = vmatpush.msra.mxu0 0.0
      %646 = vmatpush.msra.mxu0 0.0
      %647 = vmatpush.msra.mxu0 0.0
      %648 = vmatpush.msra.mxu0 0.0
      %649 = vmatpush.msra.mxu0 0.0
      %650 = vmatpush.msra.mxu0 %v630
      %651 = vmatpush.msra.mxu0 %v629
      %652 = vmatpush.msra.mxu0 %v628
      %653 = vmatpush.msra.mxu0 %v627
      %654 = vmatmul.f32.gmra.mxu0 %v636
      %v655 = vpop.f32.mrf.mxu0
      %v656 = vadd.f32 %v633, %v655
      %657 = vdwg.mxu0
      %v658 = vld [vmem:[%s6] sm:$0xff]
      %v659 = vld [vmem:[%s6 + $0x8] sm:$0xff]
      %v660 = vld [vmem:[%s6 + $0x10] sm:$0xff]
      %v661 = vld [vmem:[%s6 + $0x18] sm:$0xff]
      %663 = vrot.lane.b32.xlu0 %v656, 96
      %v664 = vpop.permute.xlu0 %663
      %vm665 = vcmask 130048
      %v666 = vsel %vm665, %v656, 0
      %v668 = vsel %vm665, %v664, 0
      %670 = vmatpush.xpose.msra.mxu0 0.0
      %671 = vmatpush.xpose.msra.mxu0 0.0
      %672 = vmatpush.xpose.msra.mxu0 0.0
      %673 = vmatpush.xpose.msra.mxu0 0.0
      %674 = vmatpush.xpose.msra.mxu0 0.0
      %675 = vmatpush.xpose.msra.mxu0 0.0
      %676 = vmatpush.xpose.msra.mxu0 0.0
      %677 = vmatpush.xpose.msra.mxu0 0.0
      %678 = vmatpush.xpose.msra.mxu0 0.0
      %679 = vmatpush.xpose.msra.mxu0 0.0
      %680 = vmatpush.xpose.msra.mxu0 0.0
      %681 = vmatpush.xpose.msra.mxu0 0.0
      %682 = vmatpush.xpose.msra.mxu0 0.0
      %683 = vmatpush.xpose.msra.mxu0 0.0
      %684 = vmatpush.xpose.msra.mxu0 0.0
      %685 = vmatpush.xpose.msra.mxu0 %v668
      %686 = vmatmul.f32.gmra.mxu0 %v666
      %v687 = vpop.f32.mrf.mxu0
      %v688 = vadd.f32 0.0, %v687
      %689 = vdwg.mxu0
      %v690 = vmul.f32 %v688, 0.25
      %v692 = vperm.slane %v586, 0
      %v694 = vadd.f32 %v690, %v692
      %vm695 = vcmask 64512
      %v696 = vsel %vm695, %v694, -inf
      %697 = vmax.xlane.f32.xlu0 %v696
      %v698 = vpop.xlane.xlu0 %697
      %v699 = vsub.f32 %v694, %v698
      %v700 = vmul.f32 %v699, 1.442695
      %v701 = vpow.pop %v700
      %v702 = vsel %vm695, %v701, 0.0
      %703 = vadd.xlane.f32.xlu0 %v702
      %v704 = vpop.xlane.xlu0 %703
      %v705 = vrcp.pop %v704
      %v706 = vmul.f32 %v701, %v705
      %707 = vrot.lane.b32.xlu0 %v656, 64
      %v708 = vpop.permute.xlu0 %707
      %v711 = vsel %vm695, %v706, 0
      %713 = vmatpush.msra.mxu0 0.0
      %714 = vmatpush.msra.mxu0 0.0
      %715 = vmatpush.msra.mxu0 0.0
      %716 = vmatpush.msra.mxu0 0.0
      %717 = vmatpush.msra.mxu0 0.0
      %718 = vmatpush.msra.mxu0 0.0
      %719 = vmatpush.msra.mxu0 0.0
      %720 = vmatpush.msra.mxu0 0.0
      %721 = vmatpush.msra.mxu0 0.0
      %722 = vmatpush.msra.mxu0 0.0
      %723 = vmatpush.msra.mxu0 0.0
      %724 = vmatpush.msra.mxu0 0.0
      %725 = vmatpush.msra.mxu0 0.0
      %726 = vmatpush.msra.mxu0 0.0
      %727 = vmatpush.msra.mxu0 0.0
      %728 = vmatpush.msra.mxu0 %v708
      %729 = vmatmul.f32.gmra.mxu0 %v711
      %v730 = vpop.f32.mrf.mxu0
      %v731 = vadd.f32 0.0, %v730
      %732 = vdwg.mxu0
      %733 = vrot.lane.b32.xlu0 %v656, 112
      %v734 = vpop.permute.xlu0 %733
      %735 = vrot.lane.b32.xlu0 %v656, 80
      %v736 = vpop.permute.xlu0 %735
      %v737 = vsel %vm665, %v734, 0
      %v739 = vsel %vm665, %v736, 0
      %741 = vmatpush.xpose.msra.mxu0 0.0
      %742 = vmatpush.xpose.msra.mxu0 0.0
      %743 = vmatpush.xpose.msra.mxu0 0.0
      %744 = vmatpush.xpose.msra.mxu0 0.0
      %745 = vmatpush.xpose.msra.mxu0 0.0
      %746 = vmatpush.xpose.msra.mxu0 0.0
      %747 = vmatpush.xpose.msra.mxu0 0.0
      %748 = vmatpush.xpose.msra.mxu0 0.0
      %749 = vmatpush.xpose.msra.mxu0 0.0
      %750 = vmatpush.xpose.msra.mxu0 0.0
      %751 = vmatpush.xpose.msra.mxu0 0.0
      %752 = vmatpush.xpose.msra.mxu0 0.0
      %753 = vmatpush.xpose.msra.mxu0 0.0
      %754 = vmatpush.xpose.msra.mxu0 0.0
      %755 = vmatpush.xpose.msra.mxu0 0.0
      %756 = vmatpush.xpose.msra.mxu0 %v739
      %757 = vmatmul.f32.gmra.mxu0 %v737
      %v758 = vpop.f32.mrf.mxu0
      %v759 = vadd.f32 0.0, %v758
      %760 = vdwg.mxu0
      %v761 = vmul.f32 %v759, 0.25
      %v762 = vadd.f32 %v761, %v692
      %v763 = vsel %vm695, %v762, -inf
      %764 = vmax.xlane.f32.xlu0 %v763
      %v765 = vpop.xlane.xlu0 %764
      %v766 = vsub.f32 %v762, %v765
      %v767 = vmul.f32 %v766, 1.442695
      %v768 = vpow.pop %v767
      %v769 = vsel %vm695, %v768, 0.0
      %770 = vadd.xlane.f32.xlu0 %v769
      %v771 = vpop.xlane.xlu0 %770
      %v772 = vrcp.pop %v771
      %v773 = vmul.f32 %v768, %v772
      %774 = vrot.lane.b32.xlu0 %v656, 48
      %v775 = vpop.permute.xlu0 %774
      %v778 = vsel %vm695, %v773, 0
      %780 = vmatpush.msra.mxu0 0.0
      %781 = vmatpush.msra.mxu0 0.0
      %782 = vmatpush.msra.mxu0 0.0
      %783 = vmatpush.msra.mxu0 0.0
      %784 = vmatpush.msra.mxu0 0.0
      %785 = vmatpush.msra.mxu0 0.0
      %786 = vmatpush.msra.mxu0 0.0
      %787 = vmatpush.msra.mxu0 0.0
      %788 = vmatpush.msra.mxu0 0.0
      %789 = vmatpush.msra.mxu0 0.0
      %790 = vmatpush.msra.mxu0 0.0
      %791 = vmatpush.msra.mxu0 0.0
      %792 = vmatpush.msra.mxu0 0.0
      %793 = vmatpush.msra.mxu0 0.0
      %794 = vmatpush.msra.mxu0 0.0
      %795 = vmatpush.msra.mxu0 %v775
      %796 = vmatmul.f32.gmra.mxu0 %v778
      %v797 = vpop.f32.mrf.mxu0
      %v798 = vadd.f32 0.0, %v797
      %799 = vdwg.mxu0
      %v801 = vsel %vm665, %v798, 0
      %803 = vmatpush.msra.mxu0 0.0
      %804 = vmatpush.msra.mxu0 0.0
      %805 = vmatpush.msra.mxu0 0.0
      %806 = vmatpush.msra.mxu0 0.0
      %807 = vmatpush.msra.mxu0 0.0
      %808 = vmatpush.msra.mxu0 0.0
      %809 = vmatpush.msra.mxu0 0.0
      %810 = vmatpush.msra.mxu0 0.0
      %811 = vmatpush.msra.mxu0 0.0
      %812 = vmatpush.msra.mxu0 0.0
      %813 = vmatpush.msra.mxu0 0.0
      %814 = vmatpush.msra.mxu0 0.0
      %815 = vmatpush.msra.mxu0 0.0
      %816 = vmatpush.msra.mxu0 0.0
      %817 = vmatpush.msra.mxu0 %v661
      %818 = vmatpush.msra.mxu0 %v660
      %819 = vmatmul.f32.gmra.mxu0 %v801
      %v820 = vpop.f32.mrf.mxu0
      %v821 = vadd.f32 0.0, %v820
      %822 = vdwg.mxu0
      %v824 = vsel %vm665, %v731, 0
      %826 = vmatpush.msra.mxu0 0.0
      %827 = vmatpush.msra.mxu0 0.0
      %828 = vmatpush.msra.mxu0 0.0
      %829 = vmatpush.msra.mxu0 0.0
      %830 = vmatpush.msra.mxu0 0.0
      %831 = vmatpush.msra.mxu0 0.0
      %832 = vmatpush.msra.mxu0 0.0
      %833 = vmatpush.msra.mxu0 0.0
      %834 = vmatpush.msra.mxu0 0.0
      %835 = vmatpush.msra.mxu0 0.0
      %836 = vmatpush.msra.mxu0 0.0
      %837 = vmatpush.msra.mxu0 0.0
      %838 = vmatpush.msra.mxu0 0.0
      %839 = vmatpush.msra.mxu0 0.0
      %840 = vmatpush.msra.mxu0 %v659
      %841 = vmatpush.msra.mxu0 %v658
      %842 = vmatmul.f32.gmra.mxu0 %v824
      %v843 = vpop.f32.mrf.mxu0
      %v844 = vadd.f32 %v821, %v843
      %845 = vdwg.mxu0
      %v846 = vld [vmem:[%s7] sm:$0x1]
      %v848 = vperm.slane %v846, 0
      %v850 = vadd.f32 %v844, %v848
      %v851 = vadd.f32 %v626, %v850
      %v852 = vld [vmem:[%s8] sm:$0x1]
      %v853 = vld [vmem:[%s9] sm:$0x1]
      %v854 = vsel %vm589, %v851, 0.0
      %855 = vadd.xlane.f32.xlu0 %v854
      %v856 = vpop.xlane.xlu0 %855
      %v857 = vmul.f32 %v856, %v599
      %v858 = vsub.f32 %v851, %v857
      %v859 = vmul.f32 %v858, %v858
      %v860 = vsel %vm589, %v859, 0.0
      %861 = vadd.xlane.f32.xlu0 %v860
      %v862 = vpop.xlane.xlu0 %861
      %v863 = vmul.f32 %v862, %v599
      %v864 = vadd.f32 %v863, 1e-12
      %v865 = vrsqrt.pop %v864
      %v866 = vmul.f32 %v865, %v864
      %v867 = vmul.f32 %v866, %v865
      %v868 = vmul.f32 0.5, %v867
      %v869 = vsub.f32 1.5, %v868
      %v870 = vmul.f32 %v865, %v869
      %vm871 = vweird.f32 %v864
      %vm872 = vweird.f32 %v865
      %vm873 = vmor %vm871, %vm872
      %v874 = vsel %vm873, %v865, %v870
      %v875 = vmul.f32 %v858, %v874
      %v877 = vperm.slane %v852, 0
      %v879 = vmul.f32 %v875, %v877
      %v881 = vperm.slane %v853, 0
      %v883 = vadd.f32 %v879, %v881
      %v884 = vld [vmem:[%s10] sm:$0xff]
      %v885 = vld [vmem:[%s10 + $0x8] sm:$0xff]
      %v886 = vld [vmem:[%s10 + $0x10] sm:$0xff]
      %v887 = vld [vmem:[%s10 + $0x18] sm:$0xff]
      %v888 = vld [vmem:[%s11] sm:$0x1]
      %v890 = vperm.slane %v888, 0
      %v893 = vsel %vm589, %v883, 0
      %895 = vmatpush.msra.mxu0 0.0
      %896 = vmatpush.msra.mxu0 0.0
      %897 = vmatpush.msra.mxu0 0.0
      %898 = vmatpush.msra.mxu0 0.0
      %899 = vmatpush.msra.mxu0 0.0
      %900 = vmatpush.msra.mxu0 0.0
      %901 = vmatpush.msra.mxu0 0.0
      %902 = vmatpush.msra.mxu0 0.0
      %903 = vmatpush.msra.mxu0 0.0
      %904 = vmatpush.msra.mxu0 0.0
      %905 = vmatpush.msra.mxu0 0.0
      %906 = vmatpush.msra.mxu0 0.0
      %907 = vmatpush.msra.mxu0 %v887
      %908 = vmatpush.msra.mxu0 %v886
      %909 = vmatpush.msra.mxu0 %v885
      %910 = vmatpush.msra.mxu0 %v884
      %911 = vmatmul.f32.gmra.mxu0 %v893
      %v912 = vpop.f32.mrf.mxu0
      %v913 = vadd.f32 %v890, %v912
      %914 = vdwg.mxu0
      %v915 = vmul.f32 %v913, 0.5
      %v916 = vmul.f32 %v913, 0.044715
      %v917 = vmul.f32 %v916, %v913
      %v918 = vmul.f32 %v917, %v913
      %v919 = vadd.f32 %v913, %v918
      %v920 = vmul.f32 %v919, 0.7978846
      %v921 = vtanh.pop %v920
      %v922 = vadd.f32 %v921, 1.0
      %v923 = vmul.f32 %v915, %v922
      %v924 = vld [vmem:[%s12] sm:$0xff]
      %v925 = vld [vmem:[%s12 + $0x8] sm:$0xff]
      %v926 = vld [vmem:[%s12 + $0x10] sm:$0xff]
      %v927 = vld [vmem:[%s12 + $0x18] sm:$0xff]
      %v928 = vld [vmem:[%s12 + $0x20] sm:$0xff]
      %v929 = vld [vmem:[%s12 + $0x28] sm:$0xff]
      %v930 = vld [vmem:[%s12 + $0x30] sm:$0xff]
      %v931 = vld [vmem:[%s12 + $0x38] sm:$0xff]
      %v932 = vld [vmem:[%s13] sm:$0x1]
      %v934 = vperm.slane %v932, 0
      %vm936 = vcmask 523264
      %v938 = vsel %vm936, %v923, 0
      %940 = vmatpush.msra.mxu0 0.0
      %941 = vmatpush.msra.mxu0 0.0
      %942 = vmatpush.msra.mxu0 0.0
      %943 = vmatpush.msra.mxu0 0.0
      %944 = vmatpush.msra.mxu0 0.0
      %945 = vmatpush.msra.mxu0 0.0
      %946 = vmatpush.msra.mxu0 0.0
      %947 = vmatpush.msra.mxu0 0.0
      %948 = vmatpush.msra.mxu0 %v931
      %949 = vmatpush.msra.mxu0 %v930
      %950 = vmatpush.msra.mxu0 %v929
      %951 = vmatpush.msra.mxu0 %v928
      %952 = vmatpush.msra.mxu0 %v927
      %953 = vmatpush.msra.mxu0 %v926
      %954 = vmatpush.msra.mxu0 %v925
      %955 = vmatpush.msra.mxu0 %v924
      %956 = vmatmul.f32.gmra.mxu0 %v938
      %v957 = vpop.f32.mrf.mxu0
      %v958 = vadd.f32 %v934, %v957
      %959 = vdwg.mxu0
      %v960 = vadd.f32 %v883, %v958
      %v961 = vld [vmem:[%s14] sm:$0x1]
      %v962 = vld [vmem:[%s15] sm:$0x1]
      %v963 = vsel %vm589, %v960, 0.0
      %964 = vadd.xlane.f32.xlu0 %v963
      %v965 = vpop.xlane.xlu0 %964
      %v966 = vmul.f32 %v965, %v599
      %v967 = vsub.f32 %v960, %v966
      %v968 = vmul.f32 %v967, %v967
      %v969 = vsel %vm589, %v968, 0.0
      %970 = vadd.xlane.f32.xlu0 %v969
      %v971 = vpop.xlane.xlu0 %970
      %v972 = vmul.f32 %v971, %v599
      %v973 = vadd.f32 %v972, 1e-12
      %v974 = vrsqrt.pop %v973
      %v975 = vmul.f32 %v974, %v973
      %v976 = vmul.f32 %v975, %v974
      %v977 = vmul.f32 0.5, %v976
      %v978 = vsub.f32 1.5, %v977
      %v979 = vmul.f32 %v974, %v978
      %vm980 = vweird.f32 %v973
      %vm981 = vweird.f32 %v974
      %vm982 = vmor %vm980, %vm981
      %v983 = vsel %vm982, %v974, %v979
      %v984 = vmul.f32 %v967, %v983
      %v986 = vperm.slane %v961, 0
      %v988 = vmul.f32 %v984, %v986
      %v990 = vperm.slane %v962, 0
      %v992 = vadd.f32 %v988, %v990
      %s993 = scalar_lea.vmem %s4, 32
      %v994 = vld [vmem:[%s993] sm:$0xff]
      %v995 = vld [vmem:[%s993 + $0x8] sm:$0xff]
      %v996 = vld [vmem:[%s993 + $0x10] sm:$0xff]
      %v997 = vld [vmem:[%s993 + $0x18] sm:$0xff]
      %s998 = scalar_lea.vmem %s5, 1
      %v999 = vld [vmem:[%s998] sm:$0x1]
      %v1001 = vperm.slane %v999, 0
      %v1004 = vsel %vm589, %v992, 0
      %1006 = vmatpush.msra.mxu0 0.0
      %1007 = vmatpush.msra.mxu0 0.0
      %1008 = vmatpush.msra.mxu0 0.0
      %1009 = vmatpush.msra.mxu0 0.0
      %1010 = vmatpush.msra.mxu0 0.0
      %1011 = vmatpush.msra.mxu0 0.0
      %1012 = vmatpush.msra.mxu0 0.0
      %1013 = vmatpush.msra.mxu0 0.0
      %1014 = vmatpush.msra.mxu0 0.0
      %1015 = vmatpush.msra.mxu0 0.0
      %1016 = vmatpush.msra.mxu0 0.0
      %1017 = vmatpush.msra.mxu0 0.0
      %1018 = vmatpush.msra.mxu0 %v997
      %1019 = vmatpush.msra.mxu0 %v996
      %1020 = vmatpush.msra.mxu0 %v995
      %1021 = vmatpush.msra.mxu0 %v994
      %1022 = vmatmul.f32.gmra.mxu0 %v1004
      %v1023 = vpop.f32.mrf.mxu0
      %v1024 = vadd.f32 %v1001, %v1023
      %1025 = vdwg.mxu0
      %s1026 = scalar_lea.vmem %s6, 32
      %v1027 = vld [vmem:[%s1026] sm:$0xff]
      %v1028 = vld [vmem:[%s1026 + $0x8] sm:$0xff]
      %v1029 = vld [vmem:[%s1026 + $0x10] sm:$0xff]
      %v1030 = vld [vmem:[%s1026 + $0x18] sm:$0xff]
      %1032 = vrot.lane.b32.xlu0 %v1024, 96
      %v1033 = vpop.permute.xlu0 %1032
      %v1034 = vsel %vm665, %v1024, 0
      %v1036 = vsel %vm665, %v1033, 0
      %1038 = vmatpush.xpose.msra.mxu0 0.0
      %1039 = vmatpush.xpose.msra.mxu0 0.0
      %1040 = vmatpush.xpose.msra.mxu0 0.0
      %1041 = vmatpush.xpose.msra.mxu0 0.0
      %1042 = vmatpush.xpose.msra.mxu0 0.0
      %1043 = vmatpush.xpose.msra.mxu0 0.0
      %1044 = vmatpush.xpose.msra.mxu0 0.0
      %1045 = vmatpush.xpose.msra.mxu0 0.0
      %1046 = vmatpush.xpose.msra.mxu0 0.0
      %1047 = vmatpush.xpose.msra.mxu0 0.0
      %1048 = vmatpush.xpose.msra.mxu0 0.0
      %1049 = vmatpush.xpose.msra.mxu0 0.0
      %1050 = vmatpush.xpose.msra.mxu0 0.0
      %1051 = vmatpush.xpose.msra.mxu0 0.0
      %1052 = vmatpush.xpose.msra.mxu0 0.0
      %1053 = vmatpush.xpose.msra.mxu0 %v1036
      %1054 = vmatmul.f32.gmra.mxu0 %v1034
      %v1055 = vpop.f32.mrf.mxu0
      %v1056 = vadd.f32 0.0, %v1055
      %1057 = vdwg.mxu0
      %v1058 = vmul.f32 %v1056, 0.25
      %v1059 = vadd.f32 %v1058, %v692
      %v1060 = vsel %vm695, %v1059, -inf
      %1061 = vmax.xlane.f32.xlu0 %v1060
      %v1062 = vpop.xlane.xlu0 %1061
      %v1063 = vsub.f32 %v1059, %v1062
      %v1064 = vmul.f32 %v1063, 1.442695
      %v1065 = vpow.pop %v1064
      %v1066 = vsel %vm695, %v1065, 0.0
      %1067 = vadd.xlane.f32.xlu0 %v1066
      %v1068 = vpop.xlane.xlu0 %1067
      %v1069 = vrcp.pop %v1068
      %v1070 = vmul.f32 %v1065, %v1069
      %1071 = vrot.lane.b32.xlu0 %v1024, 64
      %v1072 = vpop.permute.xlu0 %1071
      %v1075 = vsel %vm695, %v1070, 0
      %1077 = vmatpush.msra.mxu0 0.0
      %1078 = vmatpush.msra.mxu0 0.0
      %1079 = vmatpush.msra.mxu0 0.0
      %1080 = vmatpush.msra.mxu0 0.0
      %1081 = vmatpush.msra.mxu0 0.0
      %1082 = vmatpush.msra.mxu0 0.0
      %1083 = vmatpush.msra.mxu0 0.0
      %1084 = vmatpush.msra.mxu0 0.0
      %1085 = vmatpush.msra.mxu0 0.0
      %1086 = vmatpush.msra.mxu0 0.0
      %1087 = vmatpush.msra.mxu0 0.0
      %1088 = vmatpush.msra.mxu0 0.0
      %1089 = vmatpush.msra.mxu0 0.0
      %1090 = vmatpush.msra.mxu0 0.0
      %1091 = vmatpush.msra.mxu0 0.0
      %1092 = vmatpush.msra.mxu0 %v1072
      %1093 = vmatmul.f32.gmra.mxu0 %v1075
      %v1094 = vpop.f32.mrf.mxu0
      %v1095 = vadd.f32 0.0, %v1094
      %1096 = vdwg.mxu0
      %1097 = vrot.lane.b32.xlu0 %v1024, 112
      %v1098 = vpop.permute.xlu0 %1097
      %1099 = vrot.lane.b32.xlu0 %v1024, 80
      %v1100 = vpop.permute.xlu0 %1099
      %v1101 = vsel %vm665, %v1098, 0
      %v1103 = vsel %vm665, %v1100, 0
      %1105 = vmatpush.xpose.msra.mxu0 0.0
      %1106 = vmatpush.xpose.msra.mxu0 0.0
      %1107 = vmatpush.xpose.msra.mxu0 0.0
      %1108 = vmatpush.xpose.msra.mxu0 0.0
      %1109 = vmatpush.xpose.msra.mxu0 0.0
      %1110 = vmatpush.xpose.msra.mxu0 0.0
      %1111 = vmatpush.xpose.msra.mxu0 0.0
      %1112 = vmatpush.xpose.msra.mxu0 0.0
      %1113 = vmatpush.xpose.msra.mxu0 0.0
      %1114 = vmatpush.xpose.msra.mxu0 0.0
      %1115 = vmatpush.xpose.msra.mxu0 0.0
      %1116 = vmatpush.xpose.msra.mxu0 0.0
      %1117 = vmatpush.xpose.msra.mxu0 0.0
      %1118 = vmatpush.xpose.msra.mxu0 0.0
      %1119 = vmatpush.xpose.msra.mxu0 0.0
      %1120 = vmatpush.xpose.msra.mxu0 %v1103
      %1121 = vmatmul.f32.gmra.mxu0 %v1101
      %v1122 = vpop.f32.mrf.mxu0
      %v1123 = vadd.f32 0.0, %v1122
      %1124 = vdwg.mxu0
      %v1125 = vmul.f32 %v1123, 0.25
      %v1126 = vadd.f32 %v1125, %v692
      %v1127 = vsel %vm695, %v1126, -inf
      %1128 = vmax.xlane.f32.xlu0 %v1127
      %v1129 = vpop.xlane.xlu0 %1128
      %v1130 = vsub.f32 %v1126, %v1129
      %v1131 = vmul.f32 %v1130, 1.442695
      %v1132 = vpow.pop %v1131
      %v1133 = vsel %vm695, %v1132, 0.0
      %1134 = vadd.xlane.f32.xlu0 %v1133
      %v1135 = vpop.xlane.xlu0 %1134
      %v1136 = vrcp.pop %v1135
      %v1137 = vmul.f32 %v1132, %v1136
      %1138 = vrot.lane.b32.xlu0 %v1024, 48
      %v1139 = vpop.permute.xlu0 %1138
      %v1142 = vsel %vm695, %v1137, 0
      %1144 = vmatpush.msra.mxu0 0.0
      %1145 = vmatpush.msra.mxu0 0.0
      %1146 = vmatpush.msra.mxu0 0.0
      %1147 = vmatpush.msra.mxu0 0.0
      %1148 = vmatpush.msra.mxu0 0.0
      %1149 = vmatpush.msra.mxu0 0.0
      %1150 = vmatpush.msra.mxu0 0.0
      %1151 = vmatpush.msra.mxu0 0.0
      %1152 = vmatpush.msra.mxu0 0.0
      %1153 = vmatpush.msra.mxu0 0.0
      %1154 = vmatpush.msra.mxu0 0.0
      %1155 = vmatpush.msra.mxu0 0.0
      %1156 = vmatpush.msra.mxu0 0.0
      %1157 = vmatpush.msra.mxu0 0.0
      %1158 = vmatpush.msra.mxu0 0.0
      %1159 = vmatpush.msra.mxu0 %v1139
      %1160 = vmatmul.f32.gmra.mxu0 %v1142
      %v1161 = vpop.f32.mrf.mxu0
      %v1162 = vadd.f32 0.0, %v1161
      %1163 = vdwg.mxu0
      %v1165 = vsel %vm665, %v1162, 0
      %1167 = vmatpush.msra.mxu0 0.0
      %1168 = vmatpush.msra.mxu0 0.0
      %1169 = vmatpush.msra.mxu0 0.0
      %1170 = vmatpush.msra.mxu0 0.0
      %1171 = vmatpush.msra.mxu0 0.0
      %1172 = vmatpush.msra.mxu0 0.0
      %1173 = vmatpush.msra.mxu0 0.0
      %1174 = vmatpush.msra.mxu0 0.0
      %1175 = vmatpush.msra.mxu0 0.0
      %1176 = vmatpush.msra.mxu0 0.0
      %1177 = vmatpush.msra.mxu0 0.0
      %1178 = vmatpush.msra.mxu0 0.0
      %1179 = vmatpush.msra.mxu0 0.0
      %1180 = vmatpush.msra.mxu0 0.0
      %1181 = vmatpush.msra.mxu0 %v1030
      %1182 = vmatpush.msra.mxu0 %v1029
      %1183 = vmatmul.f32.gmra.mxu0 %v1165
      %v1184 = vpop.f32.mrf.mxu0
      %v1185 = vadd.f32 0.0, %v1184
      %1186 = vdwg.mxu0
      %v1188 = vsel %vm665, %v1095, 0
      %1190 = vmatpush.msra.mxu0 0.0
      %1191 = vmatpush.msra.mxu0 0.0
      %1192 = vmatpush.msra.mxu0 0.0
      %1193 = vmatpush.msra.mxu0 0.0
      %1194 = vmatpush.msra.mxu0 0.0
      %1195 = vmatpush.msra.mxu0 0.0
      %1196 = vmatpush.msra.mxu0 0.0
      %1197 = vmatpush.msra.mxu0 0.0
      %1198 = vmatpush.msra.mxu0 0.0
      %1199 = vmatpush.msra.mxu0 0.0
      %1200 = vmatpush.msra.mxu0 0.0
      %1201 = vmatpush.msra.mxu0 0.0
      %1202 = vmatpush.msra.mxu0 0.0
      %1203 = vmatpush.msra.mxu0 0.0
      %1204 = vmatpush.msra.mxu0 %v1028
      %1205 = vmatpush.msra.mxu0 %v1027
      %1206 = vmatmul.f32.gmra.mxu0 %v1188
      %v1207 = vpop.f32.mrf.mxu0
      %v1208 = vadd.f32 %v1185, %v1207
      %1209 = vdwg.mxu0
      %s1210 = scalar_lea.vmem %s7, 1
      %v1211 = vld [vmem:[%s1210] sm:$0x1]
      %v1213 = vperm.slane %v1211, 0
      %v1215 = vadd.f32 %v1208, %v1213
      %v1216 = vadd.f32 %v992, %v1215
      %s1217 = scalar_lea.vmem %s8, 1
      %v1218 = vld [vmem:[%s1217] sm:$0x1]
      %s1219 = scalar_lea.vmem %s9, 1
      %v1220 = vld [vmem:[%s1219] sm:$0x1]
      %v1221 = vsel %vm589, %v1216, 0.0
      %1222 = vadd.xlane.f32.xlu0 %v1221
      %v1223 = vpop.xlane.xlu0 %1222
      %v1224 = vmul.f32 %v1223, %v599
      %v1225 = vsub.f32 %v1216, %v1224
      %v1226 = vmul.f32 %v1225, %v1225
      %v1227 = vsel %vm589, %v1226, 0.0
      %1228 = vadd.xlane.f32.xlu0 %v1227
      %v1229 = vpop.xlane.xlu0 %1228
      %v1230 = vmul.f32 %v1229, %v599
      %v1231 = vadd.f32 %v1230, 1e-12
      %v1232 = vrsqrt.pop %v1231
      %v1233 = vmul.f32 %v1232, %v1231
      %v1234 = vmul.f32 %v1233, %v1232
      %v1235 = vmul.f32 0.5, %v1234
      %v1236 = vsub.f32 1.5, %v1235
      %v1237 = vmul.f32 %v1232, %v1236
      %vm1238 = vweird.f32 %v1231
      %vm1239 = vweird.f32 %v1232
      %vm1240 = vmor %vm1238, %vm1239
      %v1241 = vsel %vm1240, %v1232, %v1237
      %v1242 = vmul.f32 %v1225, %v1241
      %v1244 = vperm.slane %v1218, 0
      %v1246 = vmul.f32 %v1242, %v1244
      %v1248 = vperm.slane %v1220, 0
      %v1250 = vadd.f32 %v1246, %v1248
      %s1251 = scalar_lea.vmem %s10, 32
      %v1252 = vld [vmem:[%s1251] sm:$0xff]
      %v1253 = vld [vmem:[%s1251 + $0x8] sm:$0xff]
      %v1254 = vld [vmem:[%s1251 + $0x10] sm:$0xff]
      %v1255 = vld [vmem:[%s1251 + $0x18] sm:$0xff]
      %s1256 = scalar_lea.vmem %s11, 1
      %v1257 = vld [vmem:[%s1256] sm:$0x1]
      %v1259 = vperm.slane %v1257, 0
      %v1262 = vsel %vm589, %v1250, 0
      %1264 = vmatpush.msra.mxu0 0.0
      %1265 = vmatpush.msra.mxu0 0.0
      %1266 = vmatpush.msra.mxu0 0.0
      %1267 = vmatpush.msra.mxu0 0.0
      %1268 = vmatpush.msra.mxu0 0.0
      %1269 = vmatpush.msra.mxu0 0.0
      %1270 = vmatpush.msra.mxu0 0.0
      %1271 = vmatpush.msra.mxu0 0.0
      %1272 = vmatpush.msra.mxu0 0.0
      %1273 = vmatpush.msra.mxu0 0.0
      %1274 = vmatpush.msra.mxu0 0.0
      %1275 = vmatpush.msra.mxu0 0.0
      %1276 = vmatpush.msra.mxu0 %v1255
      %1277 = vmatpush.msra.mxu0 %v1254
      %1278 = vmatpush.msra.mxu0 %v1253
      %1279 = vmatpush.msra.mxu0 %v1252
      %1280 = vmatmul.f32.gmra.mxu0 %v1262
      %v1281 = vpop.f32.mrf.mxu0
      %v1282 = vadd.f32 %v1259, %v1281
      %1283 = vdwg.mxu0
      %v1284 = vmul.f32 %v1282, 0.5
      %v1285 = vmul.f32 %v1282, 0.044715
      %v1286 = vmul.f32 %v1285, %v1282
      %v1287 = vmul.f32 %v1286, %v1282
      %v1288 = vadd.f32 %v1282, %v1287
      %v1289 = vmul.f32 %v1288, 0.7978846
      %v1290 = vtanh.pop %v1289
      %v1291 = vadd.f32 %v1290, 1.0
      %v1292 = vmul.f32 %v1284, %v1291
      %s1293 = scalar_lea.vmem %s12, 64
      %v1294 = vld [vmem:[%s1293] sm:$0xff]
      %v1295 = vld [vmem:[%s1293 + $0x8] sm:$0xff]
      %v1296 = vld [vmem:[%s1293 + $0x10] sm:$0xff]
      %v1297 = vld [vmem:[%s1293 + $0x18] sm:$0xff]
      %v1298 = vld [vmem:[%s1293 + $0x20] sm:$0xff]
      %v1299 = vld [vmem:[%s1293 + $0x28] sm:$0xff]
      %v1300 = vld [vmem:[%s1293 + $0x30] sm:$0xff]
      %v1301 = vld [vmem:[%s1293 + $0x38] sm:$0xff]
      %s1302 = scalar_lea.vmem %s13, 1
      %v1303 = vld [vmem:[%s1302] sm:$0x1]
      %v1305 = vperm.slane %v1303, 0
      %v1308 = vsel %vm936, %v1292, 0
      %1310 = vmatpush.msra.mxu0 0.0
      %1311 = vmatpush.msra.mxu0 0.0
      %1312 = vmatpush.msra.mxu0 0.0
      %1313 = vmatpush.msra.mxu0 0.0
      %1314 = vmatpush.msra.mxu0 0.0
      %1315 = vmatpush.msra.mxu0 0.0
      %1316 = vmatpush.msra.mxu0 0.0
      %1317 = vmatpush.msra.mxu0 0.0
      %1318 = vmatpush.msra.mxu0 %v1301
      %1319 = vmatpush.msra.mxu0 %v1300
      %1320 = vmatpush.msra.mxu0 %v1299
      %1321 = vmatpush.msra.mxu0 %v1298
      %1322 = vmatpush.msra.mxu0 %v1297
      %1323 = vmatpush.msra.mxu0 %v1296
      %1324 = vmatpush.msra.mxu0 %v1295
      %1325 = vmatpush.msra.mxu0 %v1294
      %1326 = vmatmul.f32.gmra.mxu0 %v1308
      %v1327 = vpop.f32.mrf.mxu0
      %v1328 = vadd.f32 %v1305, %v1327
      %1329 = vdwg.mxu0
      %v1330 = vadd.f32 %v1250, %v1328
      %s1331 = scalar_lea.vmem %s14, 1
      %v1332 = vld [vmem:[%s1331] sm:$0x1]
      %s1333 = scalar_lea.vmem %s15, 1
      %v1334 = vld [vmem:[%s1333] sm:$0x1]
      %v1335 = vsel %vm589, %v1330, 0.0
      %1336 = vadd.xlane.f32.xlu0 %v1335
      %v1337 = vpop.xlane.xlu0 %1336
      %v1338 = vmul.f32 %v1337, %v599
      %v1339 = vsub.f32 %v1330, %v1338
      %v1340 = vmul.f32 %v1339, %v1339
      %v1341 = vsel %vm589, %v1340, 0.0
      %1342 = vadd.xlane.f32.xlu0 %v1341
      %v1343 = vpop.xlane.xlu0 %1342
      %v1344 = vmul.f32 %v1343, %v599
      %v1345 = vadd.f32 %v1344, 1e-12
      %v1346 = vrsqrt.pop %v1345
      %v1347 = vmul.f32 %v1346, %v1345
      %v1348 = vmul.f32 %v1347, %v1346
      %v1349 = vmul.f32 0.5, %v1348
      %v1350 = vsub.f32 1.5, %v1349
      %v1351 = vmul.f32 %v1346, %v1350
      %vm1352 = vweird.f32 %v1345
      %vm1353 = vweird.f32 %v1346
      %vm1354 = vmor %vm1352, %vm1353
      %v1355 = vsel %vm1354, %v1346, %v1351
      %v1356 = vmul.f32 %v1339, %v1355
      %v1358 = vperm.slane %v1332, 0
      %v1360 = vmul.f32 %v1356, %v1358
      %v1362 = vperm.slane %v1334, 0
      %v1364 = vadd.f32 %v1360, %v1362
      %v1365 = vsel %vm589, %v1364, 0.0
      %v1366 = vrot.slane %v1365, 4
      %v1367 = vadd.f32 %v1365, %v1366
      %v1368 = vrot.slane %v1367, 2
      %v1369 = vadd.f32 %v1367, %v1368
      %v1370 = vrot.slane %v1369, 1
      %v1371 = vadd.f32 %v1369, %v1370
      %v1372 = vrcp.pop 8.0
      %v1373 = vmul.f32 8.0, %v1372
      %v1374 = vsub.f32 1.0, %v1373
      %v1375 = vmul.f32 %v1372, %v1374
      %v1376 = vadd.f32 %v1372, %v1375
      %vm1377 = vweird.f32 %v1372
      %v1378 = vsel %vm1377, %v1372, %v1376
      %v1379 = vmul.f32 %v1371, %v1378
      %v1380 = vld [vmem:[%s16] sm:$0xff]
      %v1381 = vld [vmem:[%s16 + $0x8] sm:$0xff]
      %v1382 = vld [vmem:[%s16 + $0x10] sm:$0xff]
      %v1383 = vld [vmem:[%s16 + $0x18] sm:$0xff]
      %v1384 = vld [vmem:[#allocation2] sm:$0x1]
      %v1386 = vsel %vm589, %v1379, 0
      %1388 = vmatpush.msra.mxu0 0.0
      %1389 = vmatpush.msra.mxu0 0.0
      %1390 = vmatpush.msra.mxu0 0.0
      %1391 = vmatpush.msra.mxu0 0.0
      %1392 = vmatpush.msra.mxu0 0.0
      %1393 = vmatpush.msra.mxu0 0.0
      %1394 = vmatpush.msra.mxu0 0.0
      %1395 = vmatpush.msra.mxu0 0.0
      %1396 = vmatpush.msra.mxu0 0.0
      %1397 = vmatpush.msra.mxu0 0.0
      %1398 = vmatpush.msra.mxu0 0.0
      %1399 = vmatpush.msra.mxu0 0.0
      %1400 = vmatpush.msra.mxu0 %v1383
      %1401 = vmatpush.msra.mxu0 %v1382
      %1402 = vmatpush.msra.mxu0 %v1381
      %1403 = vmatpush.msra.mxu0 %v1380
      %1404 = vmatmul.f32.gmra.mxu0 %v1386
      %v1405 = vpop.f32.mrf.mxu0
      %v1406 = vadd.f32 %v1384, %v1405
      %1407 = vdwg.mxu0
      %v1408 = vxor.u32 %v1406, 2147483648
      %v1409 = vmul.f32 %v1408, 1.442695
      %v1410 = vpow.pop %v1409
      %v1411 = vadd.f32 %v1410, 1.0
      %v1412 = vrcp.pop %v1411
      %v1413 = vmul.f32 %v1411, %v1412
      %v1414 = vsub.f32 1.0, %v1413
      %v1415 = vmul.f32 %v1412, %v1414
      %v1416 = vadd.f32 %v1412, %v1415
      %vm1417 = vweird.f32 %v1411
      %vm1418 = vweird.f32 %v1412
      %vm1419 = vmor %vm1417, %vm1418
      %v1420 = vsel %vm1419, %v1412, %v1416
      %v1421 = vand.u32 2147483647, %v1411
      %vm1422 = vcmp.eq.f32.partialorder %v1421, 8.507059e+37
      %v1423 = vand.u32 %v1411, 2147483648
      %v1424 = vor.u32 1.1754944e-38, %v1423
      %v1425 = vsel %vm1422, %v1424, %v1420
      %v1426 = vmul.f32 1.0, %v1425
      %vm1427 = vcmask 0
      %1428 = vst.msk [vmem:[%s584] sm:$0x1] %vm1427, %v1426
      %p1429 = scmp.lt.s32.totalorder %s31, 1
      %s1430 = scalar_select %p1429, %s31, 1
      %s1431 = scalar_lea.vmem %s18, %s1430
      // Predicated region
      $region93: #{prof_model_forward.1} parent=91 // pred_check
        %p1432 = pneg %p437
      $region94: #{prof_model_forward.1} parent=91 // pred_check_branch
        %1434 = sbr.rel (%p1432) target = $region96
      $region95: #{prof_model_forward.1} parent=91 // pred_region
        _
      $region96: #{prof_model_forward.1} parent=91 // pred_fallthru
        _
    $region92: #{prof_model_forward.1} parent=5 // pred_fallthru
      _
    %p1435 = scmp.le.s32.totalorder 2, %s26
    // Predicated region
    $region97: #{prof_model_forward.1} parent=5 // pred_check
      %p1436 = pneg %p1435
    $region98: #{prof_model_forward.1} parent=5 // pred_check_branch
      %1438 = sbr.rel (%p1436) target = $region100
    $region99: #{prof_model_forward.1} parent=5 // pred_region
      %s1439 = ssub.s32 %s26, 2
      // Predicated region
      $region101: #{prof_model_forward.1} parent=99 // pred_check
        %p1440 = pneg %p443
      $region102: #{prof_model_forward.1} parent=99 // pred_check_branch
        %1442 = sbr.rel (%p1440) target = $region104
      $region103: #{prof_model_forward.1} parent=99 // pred_region
        %p1443 = scmp.lt.s32.totalorder %s32, 1
        %s1444 = scalar_select %p1443, %s32, 1
        %s1445 = scalar_lea.vmem %s18, %s1444
      $region104: #{prof_model_forward.1} parent=99 // pred_fallthru
        _
    $region100: #{prof_model_forward.1} parent=5 // pred_fallthru
      _
  $region6: #{prof_model_forward.1} parent=0 // loop_footer
    %s30 = sadd.s32 1, %s26
  $region7: #{prof_model_forward.1} parent=0 // loop_footer_branch
    %25 = sbr.rel target = $region3
  $region8: #{prof_model_forward.1} parent=0 // loop_exit
    _

</llo_original>
